<compile_context>
chip_gen: v7x
topology: tpu7x:2x2x1
jax: 0.10.0
libtpu: 0.0.40
codegen_flags: <defaults>
</compile_context>

<pallas_src>
import functools

import jax
import jax.numpy as jnp
import numpy as np
from jax.experimental import pallas as pl
from jax.experimental.pallas import tpu as pltpu

# Problem sizes (small, consistent with the module: x is NCHW (B, kp, H, W)).
B = 2            # batch
KP = 8           # in/out channels (k == kp in the non-downsample branch)
H = 16
W = 16
HW = H * W       # 256 lanes per image
L = B * HW       # 512 lanes: batch folded onto the minor (lane) dimension
TK = 4 * KP      # expanded channels (k * 4) = 32
R = TK // 16     # SE bottleneck width = 2
BN_EPS = 1e-5

# Column layout of the packed per-channel parameter operand (TK, 6 + 2R):
_C_PRE_S, _C_PRE_B, _C_B1, _C_BN2_S, _C_BN2_B, _C_B2 = 0, 1, 2, 3, 4, 5
_C_SE1, _C_SE2 = 6, 6 + R
_NCOLS = 6 + 2 * R


def _pick_act_dtype():
    """bf16 activations only where the VPU/EUP have a native bf16 path (v6e/v7x)."""
    try:
        kind = jax.devices()[0].device_kind.lower()
    except Exception:
        return jnp.float32
    if ("v6" in kind) or ("v7" in kind):
        return jnp.bfloat16
    return jnp.float32            # v5e and older: f32 is the faster formulation


def _gelu_tanh(x):
    # tanh-approx GELU: 0.5*x*(1 + tanh(sqrt(2/pi)*(x + 0.044715*x^3))).
    # Deliberate numerics trade vs nn.GELU(approximate='none'): max abs deviation
    # ~1e-3.  tanh executes on the EUP slot; ~6 VALU ops per element.
    c0 = 0.7978845608028654
    c1 = 0.044715
    return 0.5 * x * (1.0 + jnp.tanh(c0 * (x + c1 * (x * x * x))))


# ----------------------------------------------------------------------------- kernel
def _mbconv_kernel(x_ref, slab_ref, p_ref, w1_ref, w2_ref, o_ref, *, act_dtype):
    # ---- unpack the single small-parameter operand (one 16 KiB VMEM tile) -----
    P = p_ref[...]                               # (TK, 10) f32
    pre_s = P[:KP, _C_PRE_S:_C_PRE_S + 1]        # (KP, 1)
    pre_b = P[:KP, _C_PRE_B:_C_PRE_B + 1]
    b1    = P[:, _C_B1:_C_B1 + 1]                # (TK, 1)
    bn2_s = P[:, _C_BN2_S:_C_BN2_S + 1]
    bn2_b = P[:, _C_BN2_B:_C_BN2_B + 1]
    b2    = P[:KP, _C_B2:_C_B2 + 1]              # (KP, 1)
    se1   = P[:, _C_SE1:_C_SE1 + R]              # (TK, R)
    se2   = P[:, _C_SE2:_C_SE2 + R]              # (TK, R)

    # ---- prenorm (folded BN), both batch halves at once: (KP, 512) f32 --------
    xn = x_ref[...] * pre_s + pre_b

    # ---- mbconv[0:3]: 1x1 expansion conv (one MXU matmul over 512 lanes) + GELU
    y = jnp.dot(w1_ref[...], xn, preferred_element_type=jnp.float32) + b1
    g1 = _gelu_tanh(y.astype(act_dtype))                               # (TK, L)

    # ---- mbconv[3:6]: 3x3 depthwise conv (pad=1, groups=TK) + GELU ------------
    # slab_ref[t] already holds tap * bn1_scale * boundary_mask (BN1 folded);
    # slab_ref[9] is the precomputed constant bias map (b_dw + masked bn1_bias).
    # Centre tap (t=4, full mask) initialises the accumulator: no zero init.
    acc = g1 * slab_ref[4] + slab_ref[9]
    for t in (0, 1, 2, 3, 5, 6, 7, 8):
        delta = (t // 3 - 1) * W + (t % 3 - 1)
        acc = acc + pltpu.roll(g1, shift=(-delta) % L, axis=1) * slab_ref[t]
    g2 = _gelu_tanh(acc)                                               # (TK, L)

    # ---- mbconv[6:8]: SE + BN2 + 1x1 projection + residual, per 256-lane half -
    # (SE statistics are per image; BN2 and the SE gate fold to one mul+add).
    w2a = w2_ref[...].astype(act_dtype)                                # (KP, TK)
    for b in range(B):
        lo = b * HW
        gh = g2[:, lo:lo + HW]                                         # (TK, HW), lane-aligned slice
        # mean of y2 = bn2_s * mean(gelu(acc)) + bn2_b  (SE squeeze, off the MXU)
        mean_g = jnp.sum(gh.astype(jnp.float32), axis=1, keepdims=True) * (1.0 / HW)
        pooled = bn2_s * mean_g + bn2_b                                # (TK, 1)
        s1 = jnp.maximum(jnp.sum(pooled * se1, axis=0, keepdims=True), 0.0)        # (1, R)
        s2 = jax.nn.sigmoid(jnp.sum(se2 * s1, axis=1, keepdims=True))              # (TK, 1)
        # y3 = (gelu(acc)*bn2_s + bn2_b) * s2  folded to one mul + one add
        sc = (bn2_s * s2).astype(act_dtype)
        bi = (bn2_b * s2).astype(act_dtype)
        y3 = gh * sc + bi                                              # (TK, HW)
        out = jnp.dot(w2a, y3, preferred_element_type=jnp.float32)     # (KP, HW) f32
        out = out + b2 + xn[:, lo:lo + HW]                             # proj bias + residual (f32)
        o_ref[b] = out.astype(o_ref.dtype)                             # lane-dense (KP, 256) store


# ----------------------------------------------------------------------------- wrapper
def mbconv_forward(x_nchw, p, act_dtype=None):
    """PyTorch-equivalent forward.  x_nchw: (B, KP, H, W) float32, NCHW."""
    if act_dtype is None:
        act_dtype = _pick_act_dtype()

    # NCHW -> (C, B*H*W): channels on sublanes, batch-folded spatial on lanes.
    x2 = jnp.transpose(x_nchw.reshape(B, KP, HW).astype(jnp.float32), (1, 0, 2)).reshape(KP, L)

    # ---- precompute the fused depthwise slab: tap * bn1_scale * boundary mask -
    hh = np.arange(HW) // W
    ww = np.arange(HW) % W
    masks_np = np.empty((9, HW), np.float32)
    for t in range(9):
        dh, dw = t // 3 - 1, t % 3 - 1
        valid = (hh + dh >= 0) & (hh + dh < H) & (ww + dw >= 0) & (ww + dw < W)
        masks_np[t] = valid.astype(np.float32)               # centre tap: all ones
    masks = jnp.asarray(masks_np)                            # (9, HW)
    taps9 = p["w_dw"].reshape(TK, 9).T                       # (9, TK)
    slab = taps9[:, :, None] * p["bn1_s"][None, :, :] * masks[:, None, :]        # (9, TK, HW)
    bias_map = p["b_dw"] + p["bn1_b"] * jnp.einsum("tc,tl->cl", taps9, masks)    # (TK, HW)
    slab10 = jnp.concatenate([slab, bias_map[None]], axis=0)                     # (10, TK, HW)
    slab10 = jnp.tile(slab10, (1, 1, B)).astype(act_dtype)                       # (10, TK, L)

    # ---- pack all tiny per-channel params into one (TK, 10) operand -----------
    def pad_col(v):
        return jnp.pad(v, ((0, TK - v.shape[0]), (0, 0)))
    packed = jnp.concatenate(
        [pad_col(p["pre_s"]), pad_col(p["pre_b"]), p["b1"], p["bn2_s"], p["bn2_b"],
         pad_col(p["b2"]), p["se1"], p["se2"]], axis=1).astype(jnp.float32)      # (TK, _NCOLS)

    kernel = functools.partial(_mbconv_kernel, act_dtype=act_dtype)
    out = pl.pallas_call(
        kernel,
        out_shape=jax.ShapeDtypeStruct((B, KP, HW), jnp.float32),
        # Collapsed grid: whole working set (<1 MiB) is VMEM-resident, single
        # invocation.  On v7x the second TensorCore is left idle on purpose
        # (grid-step overhead would exceed the saved compute at this size).
    )(x2, slab10, packed,
      p["w1"].astype(jnp.float32), p["w2"].astype(jnp.float32))

    return out.reshape(B, KP, H, W)                          # back to NCHW (pure reshape)


# ----------------------------------------------------------------------------- params
def init_params(key):
    ks = jax.random.split(key, 20)

    def bn_fold(i, c):
        gamma = 1.0 + 0.1 * jax.random.normal(ks[i], (c,), jnp.float32)
        beta = 0.1 * jax.random.normal(ks[i + 1], (c,), jnp.float32)
        mean = 0.1 * jax.random.normal(ks[i + 2], (c,), jnp.float32)
        var = 1.0 + 0.1 * jax.random.uniform(ks[i + 3], (c,), dtype=jnp.float32)
        scale = gamma / jnp.sqrt(var + BN_EPS)
        bias = beta - mean * scale
        return scale.reshape(c, 1), bias.reshape(c, 1)       # per-channel columns

    def nrm(i, shape, scale):
        return scale * jax.random.normal(ks[i], shape, jnp.float32)

    pre_s, pre_b = bn_fold(0, KP)     # prenorm = BatchNorm2d(kp)
    bn1_s, bn1_b = bn_fold(4, TK)     # BatchNorm2d(tk) after expansion conv
    bn2_s, bn2_b = bn_fold(8, TK)     # BatchNorm2d(tk) after depthwise conv

    return dict(
        pre_s=pre_s, pre_b=pre_b,
        # Conv2d(k, 4k, 1): torch weight (4k, k, 1, 1) -> stored (Cout, Cin) = (TK, KP)
        w1=nrm(12, (TK, KP), 0.3), b1=nrm(13, (TK, 1), 0.1),
        bn1_s=bn1_s, bn1_b=bn1_b,
        # depthwise Conv2d(4k, 4k, 3, groups=4k): torch (4k, 1, 3, 3) -> (TK, 3, 3)
        w_dw=nrm(14, (TK, 3, 3), 0.3), b_dw=nrm(15, (TK, 1), 0.1),
        bn2_s=bn2_s, bn2_b=bn2_b,
        # SEBlock: Linear(tk, tk//16, bias=False) torch (R, TK) -> stored transposed (TK, R);
        #          Linear(tk//16, tk, bias=False) torch (TK, R) -> stored as-is (TK, R)
        se1=nrm(16, (TK, R), 0.3), se2=nrm(17, (TK, R), 0.3),
        # Conv2d(4k, kp, 1): torch (kp, 4k, 1, 1) -> (KP, TK)
        w2=nrm(18, (KP, TK), 0.2), b2=nrm(19, (KP, 1), 0.1),
    )


# ----------------------------------------------------------------------------- pure-JAX reference
def mbconv_reference(x_nchw, p):
    hp = jax.lax.Precision.HIGHEST
    x = x_nchw.reshape(B, KP, HW).astype(jnp.float32)
    xn = x * p["pre_s"] + p["pre_b"]
    y = jnp.einsum("ck,bks->bcs", p["w1"], xn, precision=hp) + p["b1"]
    y = jax.nn.gelu(y, approximate=False)
    y = y * p["bn1_s"] + p["bn1_b"]
    yimg = y.reshape(B, TK, H, W)
    yp = jnp.pad(yimg, ((0, 0), (0, 0), (1, 1), (1, 1)))
    acc = jnp.zeros_like(yimg)
    for dh in range(3):
        for dw in range(3):
            acc = acc + yp[:, :, dh:dh + H, dw:dw + W] * p["w_dw"][:, dh, dw][None, :, None, None]
    acc = acc.reshape(B, TK, HW) + p["b_dw"]
    y2 = jax.nn.gelu(acc, approximate=False)
    y2 = y2 * p["bn2_s"] + p["bn2_b"]
    pooled = jnp.mean(y2, axis=2)                                      # (B, TK)
    s1 = jnp.maximum(jnp.einsum("bc,cr->br", pooled, p["se1"], precision=hp), 0.0)
    s2 = jax.nn.sigmoid(jnp.einsum("br,cr->bc", s1, p["se2"], precision=hp))
    y3 = y2 * s2[:, :, None]
    out = jnp.einsum("pc,bcs->bps", p["w2"], y3, precision=hp) + p["b2"]
    out = out + xn
    return out.reshape(B, KP, H, W)


# ----------------------------------------------------------------------------- main
if __name__ == "__main__":
    key = jax.random.PRNGKey(0)
    k_x, k_p = jax.random.split(key)
    x = jax.random.normal(k_x, (B, KP, H, W), jnp.float32)             # NCHW, like PyTorch
    params = init_params(k_p)

    act_dtype = _pick_act_dtype()
    out = mbconv_forward(x, params, act_dtype=act_dtype)
    out = jax.block_until_ready(out)
    assert out.shape == (B, KP, H, W)

    ref = mbconv_reference(x, params)
    # f32 path keeps the original 2e-2 tolerance (tanh-GELU deviation ~1e-3);
    # the documented bf16 mixed-precision path (v6e/v7x) gets a modest cushion.
    tol = 2e-2 if act_dtype == jnp.float32 else 3e-2
    if not np.allclose(np.asarray(out), np.asarray(ref), atol=tol, rtol=tol):
        max_err = float(np.max(np.abs(np.asarray(out) - np.asarray(ref))))
        raise AssertionError(f"Pallas kernel disagrees with JAX reference (max err {max_err})")

    print("KERNEL_OK")
</pallas_src>

<mosaic_0001>
module attributes {stable_mosaic.version = 11 : i64} {
  func.func @_mbconv_kernel(%arg0: memref<8x512xf32, #tpu.memory_space<vmem>>, %arg1: memref<10x32x512xf32, #tpu.memory_space<vmem>>, %arg2: memref<32x10xf32, #tpu.memory_space<vmem>>, %arg3: memref<32x8xf32, #tpu.memory_space<vmem>>, %arg4: memref<8x32xf32, #tpu.memory_space<vmem>>, %arg5: memref<2x8x256xf32, #tpu.memory_space<vmem>>) attributes {dimension_semantics = [], scalar_prefetch = 0 : i64, scratch_operands = 0 : i64, tpu.core_type = #tpu.core_type<tc>} {
    %c0 = arith.constant 0 : index
    %c0_0 = arith.constant 0 : index
    %0 = vector.load %arg2[%c0, %c0_0] : memref<32x10xf32, #tpu.memory_space<vmem>>, vector<32x10xf32>
    %1 = vector.extract_strided_slice %0 {offsets = [0, 0], sizes = [8, 1], strides = [1, 1]} : vector<32x10xf32> to vector<8x1xf32>
    %2 = vector.extract_strided_slice %0 {offsets = [0, 1], sizes = [8, 1], strides = [1, 1]} : vector<32x10xf32> to vector<8x1xf32>
    %3 = vector.extract_strided_slice %0 {offsets = [0, 2], sizes = [32, 1], strides = [1, 1]} : vector<32x10xf32> to vector<32x1xf32>
    %4 = vector.extract_strided_slice %0 {offsets = [0, 3], sizes = [32, 1], strides = [1, 1]} : vector<32x10xf32> to vector<32x1xf32>
    %5 = vector.extract_strided_slice %0 {offsets = [0, 4], sizes = [32, 1], strides = [1, 1]} : vector<32x10xf32> to vector<32x1xf32>
    %6 = vector.extract_strided_slice %0 {offsets = [0, 5], sizes = [8, 1], strides = [1, 1]} : vector<32x10xf32> to vector<8x1xf32>
    %7 = vector.extract_strided_slice %0 {offsets = [0, 6], sizes = [32, 2], strides = [1, 1]} : vector<32x10xf32> to vector<32x2xf32>
    %8 = vector.extract_strided_slice %0 {offsets = [0, 8], sizes = [32, 2], strides = [1, 1]} : vector<32x10xf32> to vector<32x2xf32>
    %c0_1 = arith.constant 0 : index
    %c0_2 = arith.constant 0 : index
    %9 = vector.load %arg0[%c0_1, %c0_2] : memref<8x512xf32, #tpu.memory_space<vmem>>, vector<8x512xf32>
    %10 = vector.broadcast %1 : vector<8x1xf32> to vector<8x512xf32>
    %11 = arith.mulf %9, %10 : vector<8x512xf32>
    %12 = vector.broadcast %2 : vector<8x1xf32> to vector<8x512xf32>
    %13 = arith.addf %11, %12 : vector<8x512xf32>
    %c0_3 = arith.constant 0 : index
    %c0_4 = arith.constant 0 : index
    %14 = vector.load %arg3[%c0_3, %c0_4] : memref<32x8xf32, #tpu.memory_space<vmem>>, vector<32x8xf32>
    %cst = arith.constant dense<0.000000e+00> : vector<32x512xf32>
    %15 = tpu.matmul %14, %13, %cst {dimension_numbers = #tpu.dot_dimension_numbers<[1], [0], [0], [1], [0, 0, 1, 1], [], []>} : vector<32x8xf32>, vector<8x512xf32>, vector<32x512xf32> -> vector<32x512xf32>
    %16 = vector.broadcast %3 : vector<32x1xf32> to vector<32x512xf32>
    %17 = arith.addf %15, %16 : vector<32x512xf32>
    %cst_5 = arith.constant 5.000000e-01 : f32
    %18 = vector.broadcast %cst_5 : f32 to vector<32x512xf32>
    %19 = arith.mulf %18, %17 : vector<32x512xf32>
    %20 = arith.mulf %17, %17 : vector<32x512xf32>
    %21 = arith.mulf %20, %17 : vector<32x512xf32>
    %cst_6 = arith.constant 4.471500e-02 : f32
    %22 = vector.broadcast %cst_6 : f32 to vector<32x512xf32>
    %23 = arith.mulf %22, %21 : vector<32x512xf32>
    %24 = arith.addf %17, %23 : vector<32x512xf32>
    %cst_7 = arith.constant 0.797884583 : f32
    %25 = vector.broadcast %cst_7 : f32 to vector<32x512xf32>
    %26 = arith.mulf %25, %24 : vector<32x512xf32>
    %27 = math.tanh %26 : vector<32x512xf32>
    %cst_8 = arith.constant 1.000000e+00 : f32
    %28 = vector.broadcast %cst_8 : f32 to vector<32x512xf32>
    %29 = arith.addf %28, %27 : vector<32x512xf32>
    %30 = arith.mulf %19, %29 : vector<32x512xf32>
    %c4 = arith.constant 4 : index
    %c0_9 = arith.constant 0 : index
    %c0_10 = arith.constant 0 : index
    %31 = vector.load %arg1[%c4, %c0_9, %c0_10] : memref<10x32x512xf32, #tpu.memory_space<vmem>>, vector<1x32x512xf32>
    %32 = vector.shape_cast %31 : vector<1x32x512xf32> to vector<32x512xf32>
    %33 = arith.mulf %30, %32 : vector<32x512xf32>
    %c9 = arith.constant 9 : index
    %c0_11 = arith.constant 0 : index
    %c0_12 = arith.constant 0 : index
    %34 = vector.load %arg1[%c9, %c0_11, %c0_12] : memref<10x32x512xf32, #tpu.memory_space<vmem>>, vector<1x32x512xf32>
    %35 = vector.shape_cast %34 : vector<1x32x512xf32> to vector<32x512xf32>
    %36 = arith.addf %33, %35 : vector<32x512xf32>
    %c17_i32 = arith.constant 17 : i32
    %37 = tpu.dynamic_rotate %30 by %c17_i32 dim 1 : vector<32x512xf32>, i32 -> vector<32x512xf32>
    %c0_13 = arith.constant 0 : index
    %c0_14 = arith.constant 0 : index
    %c0_15 = arith.constant 0 : index
    %38 = vector.load %arg1[%c0_13, %c0_14, %c0_15] : memref<10x32x512xf32, #tpu.memory_space<vmem>>, vector<1x32x512xf32>
    %39 = vector.shape_cast %38 : vector<1x32x512xf32> to vector<32x512xf32>
    %40 = arith.mulf %37, %39 : vector<32x512xf32>
    %41 = arith.addf %36, %40 : vector<32x512xf32>
    %c16_i32 = arith.constant 16 : i32
    %42 = tpu.dynamic_rotate %30 by %c16_i32 dim 1 : vector<32x512xf32>, i32 -> vector<32x512xf32>
    %c1 = arith.constant 1 : index
    %c0_16 = arith.constant 0 : index
    %c0_17 = arith.constant 0 : index
    %43 = vector.load %arg1[%c1, %c0_16, %c0_17] : memref<10x32x512xf32, #tpu.memory_space<vmem>>, vector<1x32x512xf32>
    %44 = vector.shape_cast %43 : vector<1x32x512xf32> to vector<32x512xf32>
    %45 = arith.mulf %42, %44 : vector<32x512xf32>
    %46 = arith.addf %41, %45 : vector<32x512xf32>
    %c15_i32 = arith.constant 15 : i32
    %47 = tpu.dynamic_rotate %30 by %c15_i32 dim 1 : vector<32x512xf32>, i32 -> vector<32x512xf32>
    %c2 = arith.constant 2 : index
    %c0_18 = arith.constant 0 : index
    %c0_19 = arith.constant 0 : index
    %48 = vector.load %arg1[%c2, %c0_18, %c0_19] : memref<10x32x512xf32, #tpu.memory_space<vmem>>, vector<1x32x512xf32>
    %49 = vector.shape_cast %48 : vector<1x32x512xf32> to vector<32x512xf32>
    %50 = arith.mulf %47, %49 : vector<32x512xf32>
    %51 = arith.addf %46, %50 : vector<32x512xf32>
    %c1_i32 = arith.constant 1 : i32
    %52 = tpu.dynamic_rotate %30 by %c1_i32 dim 1 : vector<32x512xf32>, i32 -> vector<32x512xf32>
    %c3 = arith.constant 3 : index
    %c0_20 = arith.constant 0 : index
    %c0_21 = arith.constant 0 : index
    %53 = vector.load %arg1[%c3, %c0_20, %c0_21] : memref<10x32x512xf32, #tpu.memory_space<vmem>>, vector<1x32x512xf32>
    %54 = vector.shape_cast %53 : vector<1x32x512xf32> to vector<32x512xf32>
    %55 = arith.mulf %52, %54 : vector<32x512xf32>
    %56 = arith.addf %51, %55 : vector<32x512xf32>
    %c511_i32 = arith.constant 511 : i32
    %57 = tpu.dynamic_rotate %30 by %c511_i32 dim 1 : vector<32x512xf32>, i32 -> vector<32x512xf32>
    %c5 = arith.constant 5 : index
    %c0_22 = arith.constant 0 : index
    %c0_23 = arith.constant 0 : index
    %58 = vector.load %arg1[%c5, %c0_22, %c0_23] : memref<10x32x512xf32, #tpu.memory_space<vmem>>, vector<1x32x512xf32>
    %59 = vector.shape_cast %58 : vector<1x32x512xf32> to vector<32x512xf32>
    %60 = arith.mulf %57, %59 : vector<32x512xf32>
    %61 = arith.addf %56, %60 : vector<32x512xf32>
    %c497_i32 = arith.constant 497 : i32
    %62 = tpu.dynamic_rotate %30 by %c497_i32 dim 1 : vector<32x512xf32>, i32 -> vector<32x512xf32>
    %c6 = arith.constant 6 : index
    %c0_24 = arith.constant 0 : index
    %c0_25 = arith.constant 0 : index
    %63 = vector.load %arg1[%c6, %c0_24, %c0_25] : memref<10x32x512xf32, #tpu.memory_space<vmem>>, vector<1x32x512xf32>
    %64 = vector.shape_cast %63 : vector<1x32x512xf32> to vector<32x512xf32>
    %65 = arith.mulf %62, %64 : vector<32x512xf32>
    %66 = arith.addf %61, %65 : vector<32x512xf32>
    %c496_i32 = arith.constant 496 : i32
    %67 = tpu.dynamic_rotate %30 by %c496_i32 dim 1 : vector<32x512xf32>, i32 -> vector<32x512xf32>
    %c7 = arith.constant 7 : index
    %c0_26 = arith.constant 0 : index
    %c0_27 = arith.constant 0 : index
    %68 = vector.load %arg1[%c7, %c0_26, %c0_27] : memref<10x32x512xf32, #tpu.memory_space<vmem>>, vector<1x32x512xf32>
    %69 = vector.shape_cast %68 : vector<1x32x512xf32> to vector<32x512xf32>
    %70 = arith.mulf %67, %69 : vector<32x512xf32>
    %71 = arith.addf %66, %70 : vector<32x512xf32>
    %c495_i32 = arith.constant 495 : i32
    %72 = tpu.dynamic_rotate %30 by %c495_i32 dim 1 : vector<32x512xf32>, i32 -> vector<32x512xf32>
    %c8 = arith.constant 8 : index
    %c0_28 = arith.constant 0 : index
    %c0_29 = arith.constant 0 : index
    %73 = vector.load %arg1[%c8, %c0_28, %c0_29] : memref<10x32x512xf32, #tpu.memory_space<vmem>>, vector<1x32x512xf32>
    %74 = vector.shape_cast %73 : vector<1x32x512xf32> to vector<32x512xf32>
    %75 = arith.mulf %72, %74 : vector<32x512xf32>
    %76 = arith.addf %71, %75 : vector<32x512xf32>
    %cst_30 = arith.constant 5.000000e-01 : f32
    %77 = vector.broadcast %cst_30 : f32 to vector<32x512xf32>
    %78 = arith.mulf %77, %76 : vector<32x512xf32>
    %79 = arith.mulf %76, %76 : vector<32x512xf32>
    %80 = arith.mulf %79, %76 : vector<32x512xf32>
    %cst_31 = arith.constant 4.471500e-02 : f32
    %81 = vector.broadcast %cst_31 : f32 to vector<32x512xf32>
    %82 = arith.mulf %81, %80 : vector<32x512xf32>
    %83 = arith.addf %76, %82 : vector<32x512xf32>
    %cst_32 = arith.constant 0.797884583 : f32
    %84 = vector.broadcast %cst_32 : f32 to vector<32x512xf32>
    %85 = arith.mulf %84, %83 : vector<32x512xf32>
    %86 = math.tanh %85 : vector<32x512xf32>
    %cst_33 = arith.constant 1.000000e+00 : f32
    %87 = vector.broadcast %cst_33 : f32 to vector<32x512xf32>
    %88 = arith.addf %87, %86 : vector<32x512xf32>
    %89 = arith.mulf %78, %88 : vector<32x512xf32>
    %c0_34 = arith.constant 0 : index
    %c0_35 = arith.constant 0 : index
    %90 = vector.load %arg4[%c0_34, %c0_35] : memref<8x32xf32, #tpu.memory_space<vmem>>, vector<8x32xf32>
    %91 = vector.extract_strided_slice %89 {offsets = [0, 0], sizes = [32, 256], strides = [1, 1]} : vector<32x512xf32> to vector<32x256xf32>
    %cst_36 = arith.constant dense<0.000000e+00> : vector<32xf32>
    %92 = vector.multi_reduction <add>, %91, %cst_36 [1] : vector<32x256xf32> to vector<32xf32>
    %93 = vector.shape_cast %92 : vector<32xf32> to vector<32x1xf32>
    %cst_37 = arith.constant 3.906250e-03 : f32
    %94 = vector.broadcast %cst_37 : f32 to vector<32x1xf32>
    %95 = arith.mulf %93, %94 : vector<32x1xf32>
    %96 = arith.mulf %4, %95 : vector<32x1xf32>
    %97 = arith.addf %96, %5 : vector<32x1xf32>
    %98 = vector.broadcast %97 : vector<32x1xf32> to vector<32x2xf32>
    %99 = arith.mulf %98, %7 : vector<32x2xf32>
    %cst_38 = arith.constant dense<0.000000e+00> : vector<2xf32>
    %100 = vector.multi_reduction <add>, %99, %cst_38 [0] : vector<32x2xf32> to vector<2xf32>
    %101 = vector.shape_cast %100 : vector<2xf32> to vector<1x2xf32>
    %cst_39 = arith.constant 0.000000e+00 : f32
    %102 = vector.broadcast %cst_39 : f32 to vector<1x2xf32>
    %103 = arith.maximumf %101, %102 : vector<1x2xf32>
    %104 = vector.broadcast %103 : vector<1x2xf32> to vector<32x2xf32>
    %105 = arith.mulf %8, %104 : vector<32x2xf32>
    %cst_40 = arith.constant dense<0.000000e+00> : vector<32xf32>
    %106 = vector.multi_reduction <add>, %105, %cst_40 [1] : vector<32x2xf32> to vector<32xf32>
    %107 = vector.shape_cast %106 : vector<32xf32> to vector<32x1xf32>
    %108 = arith.negf %107 : vector<32x1xf32>
    %109 = math.exp %108 : vector<32x1xf32>
    %cst_41 = arith.constant 1.000000e+00 : f32
    %110 = vector.broadcast %cst_41 : f32 to vector<32x1xf32>
    %111 = arith.addf %110, %109 : vector<32x1xf32>
    %112 = arith.divf %110, %111 : vector<32x1xf32>
    %113 = arith.mulf %4, %112 : vector<32x1xf32>
    %114 = arith.mulf %5, %112 : vector<32x1xf32>
    %115 = vector.broadcast %113 : vector<32x1xf32> to vector<32x256xf32>
    %116 = arith.mulf %91, %115 : vector<32x256xf32>
    %117 = vector.broadcast %114 : vector<32x1xf32> to vector<32x256xf32>
    %118 = arith.addf %116, %117 : vector<32x256xf32>
    %cst_42 = arith.constant dense<0.000000e+00> : vector<8x256xf32>
    %119 = tpu.matmul %90, %118, %cst_42 {dimension_numbers = #tpu.dot_dimension_numbers<[1], [0], [0], [1], [0, 0, 1, 1], [], []>} : vector<8x32xf32>, vector<32x256xf32>, vector<8x256xf32> -> vector<8x256xf32>
    %120 = vector.broadcast %6 : vector<8x1xf32> to vector<8x256xf32>
    %121 = arith.addf %119, %120 : vector<8x256xf32>
    %122 = vector.extract_strided_slice %13 {offsets = [0, 0], sizes = [8, 256], strides = [1, 1]} : vector<8x512xf32> to vector<8x256xf32>
    %123 = arith.addf %121, %122 : vector<8x256xf32>
    %c0_43 = arith.constant 0 : index
    %c0_44 = arith.constant 0 : index
    %c0_45 = arith.constant 0 : index
    %124 = vector.load %arg5[%c0_43, %c0_44, %c0_45] : memref<2x8x256xf32, #tpu.memory_space<vmem>>, vector<1x8x256xf32>
    %125 = vector.shape_cast %124 : vector<1x8x256xf32> to vector<8x256xf32>
    %126 = vector.shape_cast %123 : vector<8x256xf32> to vector<1x8x256xf32>
    tpu.vector_store %arg5[%c0_43, %c0_44, %c0_45], %126 {strides = array<i32>} : memref<2x8x256xf32, #tpu.memory_space<vmem>>, vector<1x8x256xf32>,
    %127 = vector.extract_strided_slice %89 {offsets = [0, 256], sizes = [32, 256], strides = [1, 1]} : vector<32x512xf32> to vector<32x256xf32>
    %cst_46 = arith.constant dense<0.000000e+00> : vector<32xf32>
    %128 = vector.multi_reduction <add>, %127, %cst_46 [1] : vector<32x256xf32> to vector<32xf32>
    %129 = vector.shape_cast %128 : vector<32xf32> to vector<32x1xf32>
    %cst_47 = arith.constant 3.906250e-03 : f32
    %130 = vector.broadcast %cst_47 : f32 to vector<32x1xf32>
    %131 = arith.mulf %129, %130 : vector<32x1xf32>
    %132 = arith.mulf %4, %131 : vector<32x1xf32>
    %133 = arith.addf %132, %5 : vector<32x1xf32>
    %134 = vector.broadcast %133 : vector<32x1xf32> to vector<32x2xf32>
    %135 = arith.mulf %134, %7 : vector<32x2xf32>
    %cst_48 = arith.constant dense<0.000000e+00> : vector<2xf32>
    %136 = vector.multi_reduction <add>, %135, %cst_48 [0] : vector<32x2xf32> to vector<2xf32>
    %137 = vector.shape_cast %136 : vector<2xf32> to vector<1x2xf32>
    %cst_49 = arith.constant 0.000000e+00 : f32
    %138 = vector.broadcast %cst_49 : f32 to vector<1x2xf32>
    %139 = arith.maximumf %137, %138 : vector<1x2xf32>
    %140 = vector.broadcast %139 : vector<1x2xf32> to vector<32x2xf32>
    %141 = arith.mulf %8, %140 : vector<32x2xf32>
    %cst_50 = arith.constant dense<0.000000e+00> : vector<32xf32>
    %142 = vector.multi_reduction <add>, %141, %cst_50 [1] : vector<32x2xf32> to vector<32xf32>
    %143 = vector.shape_cast %142 : vector<32xf32> to vector<32x1xf32>
    %144 = arith.negf %143 : vector<32x1xf32>
    %145 = math.exp %144 : vector<32x1xf32>
    %cst_51 = arith.constant 1.000000e+00 : f32
    %146 = vector.broadcast %cst_51 : f32 to vector<32x1xf32>
    %147 = arith.addf %146, %145 : vector<32x1xf32>
    %148 = arith.divf %146, %147 : vector<32x1xf32>
    %149 = arith.mulf %4, %148 : vector<32x1xf32>
    %150 = arith.mulf %5, %148 : vector<32x1xf32>
    %151 = vector.broadcast %149 : vector<32x1xf32> to vector<32x256xf32>
    %152 = arith.mulf %127, %151 : vector<32x256xf32>
    %153 = vector.broadcast %150 : vector<32x1xf32> to vector<32x256xf32>
    %154 = arith.addf %152, %153 : vector<32x256xf32>
    %cst_52 = arith.constant dense<0.000000e+00> : vector<8x256xf32>
    %155 = tpu.matmul %90, %154, %cst_52 {dimension_numbers = #tpu.dot_dimension_numbers<[1], [0], [0], [1], [0, 0, 1, 1], [], []>} : vector<8x32xf32>, vector<32x256xf32>, vector<8x256xf32> -> vector<8x256xf32>
    %156 = vector.broadcast %6 : vector<8x1xf32> to vector<8x256xf32>
    %157 = arith.addf %155, %156 : vector<8x256xf32>
    %158 = vector.extract_strided_slice %13 {offsets = [0, 256], sizes = [8, 256], strides = [1, 1]} : vector<8x512xf32> to vector<8x256xf32>
    %159 = arith.addf %157, %158 : vector<8x256xf32>
    %c1_53 = arith.constant 1 : index
    %c0_54 = arith.constant 0 : index
    %c0_55 = arith.constant 0 : index
    %160 = vector.load %arg5[%c1_53, %c0_54, %c0_55] : memref<2x8x256xf32, #tpu.memory_space<vmem>>, vector<1x8x256xf32>
    %161 = vector.shape_cast %160 : vector<1x8x256xf32> to vector<8x256xf32>
    %162 = vector.shape_cast %159 : vector<8x256xf32> to vector<1x8x256xf32>
    tpu.vector_store %arg5[%c1_53, %c0_54, %c0_55], %162 {strides = array<i32>} : memref<2x8x256xf32, #tpu.memory_space<vmem>>, vector<1x8x256xf32>,
    return
  }
}

</mosaic_0001>

<llo_original>
// kernel: tpu_custom_call.1
$region0: #{tpu_custom_call.1}
  #allocation0 [shape = 'u32[]', space=smem, size = 0x4, offset = 0x4, fixed_abs, tag = 'smem constant byte address 0x4 - core index']
  #allocation1 [shape = 'u32[144,128]{1,0:T(1,128)}', space=vmem, size = 0x12000, scoped, tag = 'internal scratch']
  %s0 = inlined_call_operand.vmem [shape: f32[8,512], index: 0, kind: input, shape index: {}]
  %s1 = inlined_call_operand.hbm [shape: f32[10,32,512], index: 1, kind: input, shape index: {}]
  %s2 = inlined_call_operand.vmem [shape: f32[32,10], index: 2, kind: input, shape index: {}]
  %s3 = inlined_call_operand.vmem [shape: f32[32,8], index: 3, kind: input, shape index: {}]
  %s4 = inlined_call_operand.vmem [shape: f32[8,32], index: 4, kind: input, shape index: {}]
  %s5 = inlined_call_operand.hbm [shape: f32[2,8,256], index: 5, kind: output, shape index: {}]
  %s6 = sld [smem:[#allocation0]]
  $region34: #{tpu_custom_call.1} parent=0
    _
  %s8 = ssub.s32 1, %s6
  %s9 = scalar_select 0, %s8, %s6
  $region1: #{tpu_custom_call.1} parent=0
    #allocation2 [shape = 'u8[655360]{0}', space=vmem, size = 0xa0000, scoped, tag = 'input window, operand 1, single buffered']
    #allocation3 [shape = 's32[1]{0}', space=sflag, size = 0x4, scoped, tag = 'scoped memory for tpu_custom_call.1']
    #allocation4 [shape = 's32[1]{0}', space=sflag, size = 0x4, scoped, tag = 'scoped memory for tpu_custom_call.1']
    #allocation5 [shape = 'u8[16384]{0}', space=vmem, size = 0x4000, scoped, tag = 'output window, operand 0, single buffered']
    %10 = vsyncpa [#allocation3], 0
    %11 = vsyncpa [#allocation4], 0
    // Predicated region
    $region2: #{tpu_custom_call.1} parent=1 // pred_check
      _
    $region3: #{tpu_custom_call.1} parent=1 // pred_check_branch
      %13 = sbr.rel (0) target = $region5
    $region4: #{tpu_custom_call.1} parent=1 // pred_region
      _
    $region5: #{tpu_custom_call.1} parent=1 // pred_fallthru
      _
    // Predicated region
    $region6: #{tpu_custom_call.1} parent=1 // pred_check
      _
    $region7: #{tpu_custom_call.1} parent=1 // pred_check_branch
      %15 = sbr.rel (0) target = $region9
    $region8: #{tpu_custom_call.1} parent=1 // pred_region
      %s17 = ssub.s32 20480, 20480
      %18 = vsyncadd [#allocation3], %s17
      %s19 = sshll.u32 [#allocation2], 4
      %s20 = int_to_ptr.vmem [resolvable:$true] %s19
      %25 = dma.hbm_to_vmem [thread:$0]  %s1, 20480, %s20, [#allocation3], 512, 512, 32
    $region9: #{tpu_custom_call.1} parent=1 // pred_fallthru
      _
    // Predicated region
    $region10: #{tpu_custom_call.1} parent=1 // pred_check
      _
    $region11: #{tpu_custom_call.1} parent=1 // pred_check_branch
      %27 = sbr.rel (0) target = $region13
    $region12: #{tpu_custom_call.1} parent=1 // pred_region
      _
    $region13: #{tpu_custom_call.1} parent=1 // pred_fallthru
      _
    // Predicated region
    $region14: #{tpu_custom_call.1} parent=1 // pred_check
      _
    $region15: #{tpu_custom_call.1} parent=1 // pred_check_branch
      %29 = sbr.rel (0) target = $region17
    $region16: #{tpu_custom_call.1} parent=1 // pred_region
      _
    $region17: #{tpu_custom_call.1} parent=1 // pred_fallthru
      _
    // Predicated region
    $region18: #{tpu_custom_call.1} parent=1 // pred_check
      _
    $region19: #{tpu_custom_call.1} parent=1 // pred_check_branch
      %31 = sbr.rel (0) target = $region21
    $region20: #{tpu_custom_call.1} parent=1 // pred_region
      _
    $region21: #{tpu_custom_call.1} parent=1 // pred_fallthru
      _
    // Predicated region
    $region22: #{tpu_custom_call.1} parent=1 // pred_check
      _
    $region23: #{tpu_custom_call.1} parent=1 // pred_check_branch
      %33 = sbr.rel (0) target = $region25
    $region24: #{tpu_custom_call.1} parent=1 // pred_region
      %34 = dma.done [#allocation3], 20480
    $region25: #{tpu_custom_call.1} parent=1 // pred_fallthru
      _
    %v35 = vld [vmem:[%s2] sm:$0xff]
    %v36 = vld [vmem:[%s2 + $0x8] sm:$0xff]
    %v37 = vld [vmem:[%s2 + $0x10] sm:$0xff]
    %v38 = vld [vmem:[%s2 + $0x18] sm:$0xff]
    %v39 = vld [vmem:[%s0] sm:$0xff]
    %v40 = vld [vmem:[%s0 + $0x8] sm:$0xff]
    %v41 = vld [vmem:[%s0 + $0x10] sm:$0xff]
    %v42 = vld [vmem:[%s0 + $0x18] sm:$0xff]
    %44 = vset.pattern.permute.xlu0 0
    %45 = vperm.xlu0 %44, %v35
    %v46 = vpop.permute.xlu0 %45
    %v48 = vmul.f32 %v39, %v46
    %v49 = vmul.f32 %v40, %v46
    %v50 = vmul.f32 %v41, %v46
    %v51 = vmul.f32 %v42, %v46
    %52 = vset.pattern.permute.xlu0 1
    %53 = vperm.xlu0 %52, %v35
    %v54 = vpop.permute.xlu0 %53
    %v56 = vadd.f32 %v48, %v54
    %v57 = vadd.f32 %v49, %v54
    %v58 = vadd.f32 %v50, %v54
    %v59 = vadd.f32 %v51, %v54
    %v60 = vld [vmem:[%s3] sm:$0xff]
    %v61 = vld [vmem:[%s3 + $0x8] sm:$0xff]
    %v62 = vld [vmem:[%s3 + $0x10] sm:$0xff]
    %v63 = vld [vmem:[%s3 + $0x18] sm:$0xff]
    %64 = vset.pattern.permute.xlu0 2
    %65 = vperm.xlu0 %64, %v35
    %v66 = vpop.permute.xlu0 %65
    %69 = vset.pattern.permute.xlu0 2
    %70 = vperm.xlu0 %69, %v36
    %v71 = vpop.permute.xlu0 %70
    %74 = vset.pattern.permute.xlu0 2
    %75 = vperm.xlu0 %74, %v37
    %v76 = vpop.permute.xlu0 %75
    %79 = vset.pattern.permute.xlu0 2
    %80 = vperm.xlu0 %79, %v38
    %v81 = vpop.permute.xlu0 %80
    %vm83 = vcmask 64512
    %v85 = vsel %vm83, %v60, 0
    %v88 = vsel %vm83, %v61, 0
    %v91 = vsel %vm83, %v62, 0
    %v94 = vsel %vm83, %v63, 0
    %96 = vmatprep.subr.mxu0 %v57
    %97 = vmatpush1.msra.mxu0 %v56
    %98 = vmatprep.subr.mxu0 0.0
    %99 = vmatpush1.msra.mxu0 0.0
    %100 = vmatprep.subr.mxu0 0.0
    %101 = vmatpush1.msra.mxu0 0.0
    %102 = vmatprep.subr.mxu0 0.0
    %103 = vmatpush1.msra.mxu0 0.0
    %104 = vmatprep.subr.mxu0 0.0
    %105 = vmatpush1.msra.mxu0 0.0
    %106 = vmatprep.subr.mxu0 0.0
    %107 = vmatpush1.msra.mxu0 0.0
    %108 = vmatprep.subr.mxu0 0.0
    %109 = vmatpush1.msra.mxu0 0.0
    %110 = vmatprep.subr.mxu0 0.0
    %111 = vmatpush1.msra.mxu0 0.0
    %112 = vmatprep.subr.mxu0 0.0
    %113 = vmatpush1.msra.mxu0 0.0
    %114 = vmatprep.subr.mxu0 0.0
    %115 = vmatpush1.msra.mxu0 0.0
    %116 = vmatprep.subr.mxu0 0.0
    %117 = vmatpush1.msra.mxu0 0.0
    %118 = vmatprep.subr.mxu0 0.0
    %119 = vmatpush1.msra.mxu0 0.0
    %120 = vmatprep.subr.mxu0 0.0
    %121 = vmatpush1.msra.mxu0 0.0
    %122 = vmatprep.subr.mxu0 0.0
    %123 = vmatpush1.msra.mxu0 0.0
    %124 = vmatprep.subr.mxu0 0.0
    %125 = vmatpush1.msra.mxu0 0.0
    %126 = vmatprep.subr.mxu0 0.0
    %127 = vmatpush1.msra.mxu0 0.0
    %128 = vmatprep.subr.mxu0 0.0
    %129 = vmatpush1.msra.mxu0 0.0
    %130 = vmatprep.subr.mxu0 0.0
    %131 = vmatpush1.msra.mxu0 0.0
    %132 = vmatprep.subr.mxu0 0.0
    %133 = vmatpush1.msra.mxu0 0.0
    %134 = vmatprep.subr.mxu0 0.0
    %135 = vmatpush1.msra.mxu0 0.0
    %136 = vmatprep.subr.mxu0 0.0
    %137 = vmatpush1.msra.mxu0 0.0
    %138 = vmatprep.subr.mxu0 0.0
    %139 = vmatpush1.msra.mxu0 0.0
    %140 = vmatprep.subr.mxu0 0.0
    %141 = vmatpush1.msra.mxu0 0.0
    %142 = vmatprep.subr.mxu0 0.0
    %143 = vmatpush1.msra.mxu0 0.0
    %144 = vmatprep.subr.mxu0 0.0
    %145 = vmatpush1.msra.mxu0 0.0
    %146 = vmatprep.subr.mxu0 0.0
    %147 = vmatpush1.msra.mxu0 0.0
    %148 = vmatprep.subr.mxu0 0.0
    %149 = vmatpush1.msra.mxu0 0.0
    %150 = vmatprep.subr.mxu0 0.0
    %151 = vmatpush1.msra.mxu0 0.0
    %152 = vmatprep.subr.mxu0 0.0
    %153 = vmatpush1.msra.mxu0 0.0
    %154 = vmatprep.subr.mxu0 0.0
    %155 = vmatpush1.msra.mxu0 0.0
    %156 = vmatprep.subr.mxu0 0.0
    %157 = vmatpush1.msra.mxu0 0.0
    %158 = vmatprep.subr.mxu0 0.0
    %159 = vmatpush1.msra.mxu0 0.0
    %160 = vmatprep.mubr.f32.mxu0 0.0
    %161 = vmatmul.mubr.f32.gmra.mrb[0].mxu0 %v85
    %v162 = vpop.f32.mrb[0].mxu0
    %v163 = vadd.f32 %v66, %v162
    %v164 = vpop.f32.mrb[0].mxu0
    %v165 = vadd.f32 %v66, %v164
    %166 = vmatprep.mubr.f32.mxu0 0.0
    %167 = vmatmul.mubr.f32.gmra.mrb[0].mxu0 %v88
    %v168 = vpop.f32.mrb[0].mxu0
    %v169 = vadd.f32 %v71, %v168
    %v170 = vpop.f32.mrb[0].mxu0
    %v171 = vadd.f32 %v71, %v170
    %172 = vmatprep.mubr.f32.mxu0 0.0
    %173 = vmatmul.mubr.f32.gmra.mrb[0].mxu0 %v91
    %v174 = vpop.f32.mrb[0].mxu0
    %v175 = vadd.f32 %v76, %v174
    %v176 = vpop.f32.mrb[0].mxu0
    %v177 = vadd.f32 %v76, %v176
    %178 = vmatprep.mubr.f32.mxu0 0.0
    %179 = vmatmul.mubr.f32.gmra.mrb[0].mxu0 %v94
    %v180 = vpop.f32.mrb[0].mxu0
    %v181 = vadd.f32 %v81, %v180
    %v182 = vpop.f32.mrb[0].mxu0
    %v183 = vadd.f32 %v81, %v182
    %184 = vdwg.mxu0
    %185 = vmatprep.subr.mxu0 %v59
    %186 = vmatpush1.msra.mxu0 %v58
    %187 = vmatprep.subr.mxu0 0.0
    %188 = vmatpush1.msra.mxu0 0.0
    %189 = vmatprep.subr.mxu0 0.0
    %190 = vmatpush1.msra.mxu0 0.0
    %191 = vmatprep.subr.mxu0 0.0
    %192 = vmatpush1.msra.mxu0 0.0
    %193 = vmatprep.subr.mxu0 0.0
    %194 = vmatpush1.msra.mxu0 0.0
    %195 = vmatprep.subr.mxu0 0.0
    %196 = vmatpush1.msra.mxu0 0.0
    %197 = vmatprep.subr.mxu0 0.0
    %198 = vmatpush1.msra.mxu0 0.0
    %199 = vmatprep.subr.mxu0 0.0
    %200 = vmatpush1.msra.mxu0 0.0
    %201 = vmatprep.subr.mxu0 0.0
    %202 = vmatpush1.msra.mxu0 0.0
    %203 = vmatprep.subr.mxu0 0.0
    %204 = vmatpush1.msra.mxu0 0.0
    %205 = vmatprep.subr.mxu0 0.0
    %206 = vmatpush1.msra.mxu0 0.0
    %207 = vmatprep.subr.mxu0 0.0
    %208 = vmatpush1.msra.mxu0 0.0
    %209 = vmatprep.subr.mxu0 0.0
    %210 = vmatpush1.msra.mxu0 0.0
    %211 = vmatprep.subr.mxu0 0.0
    %212 = vmatpush1.msra.mxu0 0.0
    %213 = vmatprep.subr.mxu0 0.0
    %214 = vmatpush1.msra.mxu0 0.0
    %215 = vmatprep.subr.mxu0 0.0
    %216 = vmatpush1.msra.mxu0 0.0
    %217 = vmatprep.subr.mxu0 0.0
    %218 = vmatpush1.msra.mxu0 0.0
    %219 = vmatprep.subr.mxu0 0.0
    %220 = vmatpush1.msra.mxu0 0.0
    %221 = vmatprep.subr.mxu0 0.0
    %222 = vmatpush1.msra.mxu0 0.0
    %223 = vmatprep.subr.mxu0 0.0
    %224 = vmatpush1.msra.mxu0 0.0
    %225 = vmatprep.subr.mxu0 0.0
    %226 = vmatpush1.msra.mxu0 0.0
    %227 = vmatprep.subr.mxu0 0.0
    %228 = vmatpush1.msra.mxu0 0.0
    %229 = vmatprep.subr.mxu0 0.0
    %230 = vmatpush1.msra.mxu0 0.0
    %231 = vmatprep.subr.mxu0 0.0
    %232 = vmatpush1.msra.mxu0 0.0
    %233 = vmatprep.subr.mxu0 0.0
    %234 = vmatpush1.msra.mxu0 0.0
    %235 = vmatprep.subr.mxu0 0.0
    %236 = vmatpush1.msra.mxu0 0.0
    %237 = vmatprep.subr.mxu0 0.0
    %238 = vmatpush1.msra.mxu0 0.0
    %239 = vmatprep.subr.mxu0 0.0
    %240 = vmatpush1.msra.mxu0 0.0
    %241 = vmatprep.subr.mxu0 0.0
    %242 = vmatpush1.msra.mxu0 0.0
    %243 = vmatprep.subr.mxu0 0.0
    %244 = vmatpush1.msra.mxu0 0.0
    %245 = vmatprep.subr.mxu0 0.0
    %246 = vmatpush1.msra.mxu0 0.0
    %247 = vmatprep.subr.mxu0 0.0
    %248 = vmatpush1.msra.mxu0 0.0
    %249 = vmatprep.mubr.f32.mxu0 0.0
    %250 = vmatmul.mubr.f32.gmra.mrb[0].mxu0 %v85
    %v251 = vpop.f32.mrb[0].mxu0
    %v252 = vadd.f32 %v66, %v251
    %v253 = vpop.f32.mrb[0].mxu0
    %v254 = vadd.f32 %v66, %v253
    %255 = vmatprep.mubr.f32.mxu0 0.0
    %256 = vmatmul.mubr.f32.gmra.mrb[0].mxu0 %v88
    %v257 = vpop.f32.mrb[0].mxu0
    %v258 = vadd.f32 %v71, %v257
    %v259 = vpop.f32.mrb[0].mxu0
    %v260 = vadd.f32 %v71, %v259
    %261 = vmatprep.mubr.f32.mxu0 0.0
    %262 = vmatmul.mubr.f32.gmra.mrb[0].mxu0 %v91
    %v263 = vpop.f32.mrb[0].mxu0
    %v264 = vadd.f32 %v76, %v263
    %v265 = vpop.f32.mrb[0].mxu0
    %v266 = vadd.f32 %v76, %v265
    %267 = vmatprep.mubr.f32.mxu0 0.0
    %268 = vmatmul.mubr.f32.gmra.mrb[0].mxu0 %v94
    %v269 = vpop.f32.mrb[0].mxu0
    %v270 = vadd.f32 %v81, %v269
    %v271 = vpop.f32.mrb[0].mxu0
    %v272 = vadd.f32 %v81, %v271
    %273 = vdwg.mxu0
    %v274 = vmul.f32 %v163, 0.5
    %v275 = vmul.f32 %v165, 0.5
    %v276 = vmul.f32 %v252, 0.5
    %v277 = vmul.f32 %v254, 0.5
    %v278 = vmul.f32 %v169, 0.5
    %v279 = vmul.f32 %v171, 0.5
    %v280 = vmul.f32 %v258, 0.5
    %v281 = vmul.f32 %v260, 0.5
    %v282 = vmul.f32 %v175, 0.5
    %v283 = vmul.f32 %v177, 0.5
    %v284 = vmul.f32 %v264, 0.5
    %v285 = vmul.f32 %v266, 0.5
    %v286 = vmul.f32 %v181, 0.5
    %v287 = vmul.f32 %v183, 0.5
    %v288 = vmul.f32 %v270, 0.5
    %v289 = vmul.f32 %v272, 0.5
    %v290 = vmul.f32 %v163, %v163
    %v291 = vmul.f32 %v165, %v165
    %v292 = vmul.f32 %v252, %v252
    %v293 = vmul.f32 %v254, %v254
    %v294 = vmul.f32 %v169, %v169
    %v295 = vmul.f32 %v171, %v171
    %v296 = vmul.f32 %v258, %v258
    %v297 = vmul.f32 %v260, %v260
    %v298 = vmul.f32 %v175, %v175
    %v299 = vmul.f32 %v177, %v177
    %v300 = vmul.f32 %v264, %v264
    %v301 = vmul.f32 %v266, %v266
    %v302 = vmul.f32 %v181, %v181
    %v303 = vmul.f32 %v183, %v183
    %v304 = vmul.f32 %v270, %v270
    %v305 = vmul.f32 %v272, %v272
    %v306 = vmul.f32 %v290, %v163
    %v307 = vmul.f32 %v291, %v165
    %v308 = vmul.f32 %v292, %v252
    %v309 = vmul.f32 %v293, %v254
    %v310 = vmul.f32 %v294, %v169
    %v311 = vmul.f32 %v295, %v171
    %v312 = vmul.f32 %v296, %v258
    %v313 = vmul.f32 %v297, %v260
    %v314 = vmul.f32 %v298, %v175
    %v315 = vmul.f32 %v299, %v177
    %v316 = vmul.f32 %v300, %v264
    %v317 = vmul.f32 %v301, %v266
    %v318 = vmul.f32 %v302, %v181
    %v319 = vmul.f32 %v303, %v183
    %v320 = vmul.f32 %v304, %v270
    %v321 = vmul.f32 %v305, %v272
    %v322 = vmul.f32 %v306, 0.044715
    %v323 = vmul.f32 %v307, 0.044715
    %v324 = vmul.f32 %v308, 0.044715
    %v325 = vmul.f32 %v309, 0.044715
    %v326 = vmul.f32 %v310, 0.044715
    %v327 = vmul.f32 %v311, 0.044715
    %v328 = vmul.f32 %v312, 0.044715
    %v329 = vmul.f32 %v313, 0.044715
    %v330 = vmul.f32 %v314, 0.044715
    %v331 = vmul.f32 %v315, 0.044715
    %v332 = vmul.f32 %v316, 0.044715
    %v333 = vmul.f32 %v317, 0.044715
    %v334 = vmul.f32 %v318, 0.044715
    %v335 = vmul.f32 %v319, 0.044715
    %v336 = vmul.f32 %v320, 0.044715
    %v337 = vmul.f32 %v321, 0.044715
    %v338 = vadd.f32 %v163, %v322
    %v339 = vadd.f32 %v165, %v323
    %v340 = vadd.f32 %v252, %v324
    %v341 = vadd.f32 %v254, %v325
    %v342 = vadd.f32 %v169, %v326
    %v343 = vadd.f32 %v171, %v327
    %v344 = vadd.f32 %v258, %v328
    %v345 = vadd.f32 %v260, %v329
    %v346 = vadd.f32 %v175, %v330
    %v347 = vadd.f32 %v177, %v331
    %v348 = vadd.f32 %v264, %v332
    %v349 = vadd.f32 %v266, %v333
    %v350 = vadd.f32 %v181, %v334
    %v351 = vadd.f32 %v183, %v335
    %v352 = vadd.f32 %v270, %v336
    %v353 = vadd.f32 %v272, %v337
    %v354 = vmul.f32 %v338, 0.7978846
    %v355 = vmul.f32 %v339, 0.7978846
    %v356 = vmul.f32 %v340, 0.7978846
    %v357 = vmul.f32 %v341, 0.7978846
    %v358 = vmul.f32 %v342, 0.7978846
    %v359 = vmul.f32 %v343, 0.7978846
    %v360 = vmul.f32 %v344, 0.7978846
    %v361 = vmul.f32 %v345, 0.7978846
    %v362 = vmul.f32 %v346, 0.7978846
    %v363 = vmul.f32 %v347, 0.7978846
    %v364 = vmul.f32 %v348, 0.7978846
    %v365 = vmul.f32 %v349, 0.7978846
    %v366 = vmul.f32 %v350, 0.7978846
    %v367 = vmul.f32 %v351, 0.7978846
    %v368 = vmul.f32 %v352, 0.7978846
    %v369 = vmul.f32 %v353, 0.7978846
    %v370 = vtanh.pop %v354
    %v371 = vtanh.pop %v355
    %v372 = vtanh.pop %v356
    %v373 = vtanh.pop %v357
    %v374 = vtanh.pop %v358
    %v375 = vtanh.pop %v359
    %v376 = vtanh.pop %v360
    %v377 = vtanh.pop %v361
    %v378 = vtanh.pop %v362
    %v379 = vtanh.pop %v363
    %v380 = vtanh.pop %v364
    %v381 = vtanh.pop %v365
    %v382 = vtanh.pop %v366
    %v383 = vtanh.pop %v367
    %v384 = vtanh.pop %v368
    %v385 = vtanh.pop %v369
    %v386 = vadd.f32 %v370, 1.0
    %v387 = vadd.f32 %v371, 1.0
    %v388 = vadd.f32 %v372, 1.0
    %v389 = vadd.f32 %v373, 1.0
    %v390 = vadd.f32 %v374, 1.0
    %v391 = vadd.f32 %v375, 1.0
    %v392 = vadd.f32 %v376, 1.0
    %v393 = vadd.f32 %v377, 1.0
    %v394 = vadd.f32 %v378, 1.0
    %v395 = vadd.f32 %v379, 1.0
    %v396 = vadd.f32 %v380, 1.0
    %v397 = vadd.f32 %v381, 1.0
    %v398 = vadd.f32 %v382, 1.0
    %v399 = vadd.f32 %v383, 1.0
    %v400 = vadd.f32 %v384, 1.0
    %v401 = vadd.f32 %v385, 1.0
    %v402 = vmul.f32 %v274, %v386
    %v403 = vmul.f32 %v275, %v387
    %v404 = vmul.f32 %v276, %v388
    %v405 = vmul.f32 %v277, %v389
    %v406 = vmul.f32 %v278, %v390
    %v407 = vmul.f32 %v279, %v391
    %v408 = vmul.f32 %v280, %v392
    %v409 = vmul.f32 %v281, %v393
    %v410 = vmul.f32 %v282, %v394
    %v411 = vmul.f32 %v283, %v395
    %v412 = vmul.f32 %v284, %v396
    %v413 = vmul.f32 %v285, %v397
    %v414 = vmul.f32 %v286, %v398
    %v415 = vmul.f32 %v287, %v399
    %v416 = vmul.f32 %v288, %v400
    %v417 = vmul.f32 %v289, %v401
    %s418 = scalar_lea.vmem [#allocation2], 512
    %v419 = vld [vmem:[%s418] sm:$0xff]
    %v420 = vld [vmem:[%s418 + $0x8] sm:$0xff]
    %v421 = vld [vmem:[%s418 + $0x10] sm:$0xff]
    %v422 = vld [vmem:[%s418 + $0x18] sm:$0xff]
    %v423 = vld [vmem:[%s418 + $0x20] sm:$0xff]
    %v424 = vld [vmem:[%s418 + $0x28] sm:$0xff]
    %v425 = vld [vmem:[%s418 + $0x30] sm:$0xff]
    %v426 = vld [vmem:[%s418 + $0x38] sm:$0xff]
    %v427 = vld [vmem:[%s418 + $0x40] sm:$0xff]
    %v428 = vld [vmem:[%s418 + $0x48] sm:$0xff]
    %v429 = vld [vmem:[%s418 + $0x50] sm:$0xff]
    %v430 = vld [vmem:[%s418 + $0x58] sm:$0xff]
    %v431 = vld [vmem:[%s418 + $0x60] sm:$0xff]
    %v432 = vld [vmem:[%s418 + $0x68] sm:$0xff]
    %v433 = vld [vmem:[%s418 + $0x70] sm:$0xff]
    %v434 = vld [vmem:[%s418 + $0x78] sm:$0xff]
    %v435 = vmul.f32 %v402, %v419
    %v436 = vmul.f32 %v403, %v420
    %v437 = vmul.f32 %v404, %v421
    %v438 = vmul.f32 %v405, %v422
    %v439 = vmul.f32 %v406, %v423
    %v440 = vmul.f32 %v407, %v424
    %v441 = vmul.f32 %v408, %v425
    %v442 = vmul.f32 %v409, %v426
    %v443 = vmul.f32 %v410, %v427
    %v444 = vmul.f32 %v411, %v428
    %v445 = vmul.f32 %v412, %v429
    %v446 = vmul.f32 %v413, %v430
    %v447 = vmul.f32 %v414, %v431
    %v448 = vmul.f32 %v415, %v432
    %v449 = vmul.f32 %v416, %v433
    %v450 = vmul.f32 %v417, %v434
    %s451 = scalar_lea.vmem [#allocation2], 1152
    %v452 = vld [vmem:[%s451] sm:$0xff]
    %v453 = vld [vmem:[%s451 + $0x8] sm:$0xff]
    %v454 = vld [vmem:[%s451 + $0x10] sm:$0xff]
    %v455 = vld [vmem:[%s451 + $0x18] sm:$0xff]
    %v456 = vld [vmem:[%s451 + $0x20] sm:$0xff]
    %v457 = vld [vmem:[%s451 + $0x28] sm:$0xff]
    %v458 = vld [vmem:[%s451 + $0x30] sm:$0xff]
    %v459 = vld [vmem:[%s451 + $0x38] sm:$0xff]
    %v460 = vld [vmem:[%s451 + $0x40] sm:$0xff]
    %v461 = vld [vmem:[%s451 + $0x48] sm:$0xff]
    %v462 = vld [vmem:[%s451 + $0x50] sm:$0xff]
    %v463 = vld [vmem:[%s451 + $0x58] sm:$0xff]
    %v464 = vld [vmem:[%s451 + $0x60] sm:$0xff]
    %v465 = vld [vmem:[%s451 + $0x68] sm:$0xff]
    %v466 = vld [vmem:[%s451 + $0x70] sm:$0xff]
    %v467 = vld [vmem:[%s451 + $0x78] sm:$0xff]
    %v468 = vadd.f32 %v435, %v452
    %v469 = vadd.f32 %v436, %v453
    %v470 = vadd.f32 %v437, %v454
    %v471 = vadd.f32 %v438, %v455
    %v472 = vadd.f32 %v439, %v456
    %v473 = vadd.f32 %v440, %v457
    %v474 = vadd.f32 %v441, %v458
    %v475 = vadd.f32 %v442, %v459
    %v476 = vadd.f32 %v443, %v460
    %v477 = vadd.f32 %v444, %v461
    %v478 = vadd.f32 %v445, %v462
    %v479 = vadd.f32 %v446, %v463
    %v480 = vadd.f32 %v447, %v464
    %v481 = vadd.f32 %v448, %v465
    %v482 = vadd.f32 %v449, %v466
    %v483 = vadd.f32 %v450, %v467
    %484 = vrot.lane.b32.xlu0 %v402, 17
    %v485 = vpop.permute.xlu0 %484
    %486 = vrot.lane.b32.xlu0 %v406, 17
    %v487 = vpop.permute.xlu0 %486
    %488 = vrot.lane.b32.xlu0 %v410, 17
    %v489 = vpop.permute.xlu0 %488
    %490 = vrot.lane.b32.xlu0 %v414, 17
    %v491 = vpop.permute.xlu0 %490
    %492 = vrot.lane.b32.xlu0 %v403, 17
    %v493 = vpop.permute.xlu0 %492
    %494 = vrot.lane.b32.xlu0 %v407, 17
    %v495 = vpop.permute.xlu0 %494
    %496 = vrot.lane.b32.xlu0 %v411, 17
    %v497 = vpop.permute.xlu0 %496
    %498 = vrot.lane.b32.xlu0 %v415, 17
    %v499 = vpop.permute.xlu0 %498
    %500 = vrot.lane.b32.xlu0 %v404, 17
    %v501 = vpop.permute.xlu0 %500
    %502 = vrot.lane.b32.xlu0 %v408, 17
    %v503 = vpop.permute.xlu0 %502
    %504 = vrot.lane.b32.xlu0 %v412, 17
    %v505 = vpop.permute.xlu0 %504
    %506 = vrot.lane.b32.xlu0 %v416, 17
    %v507 = vpop.permute.xlu0 %506
    %508 = vrot.lane.b32.xlu0 %v405, 17
    %v509 = vpop.permute.xlu0 %508
    %510 = vrot.lane.b32.xlu0 %v409, 17
    %v511 = vpop.permute.xlu0 %510
    %512 = vrot.lane.b32.xlu0 %v413, 17
    %v513 = vpop.permute.xlu0 %512
    %514 = vrot.lane.b32.xlu0 %v417, 17
    %v515 = vpop.permute.xlu0 %514
    %v516 = vlaneseq
    %v517 = vand.u32 %v516, 127
    %vm518 = vcmp.lt.s32.totalorder %v517, 17
    %v519 = vsel %vm518, %v501, %v509
    %v520 = vsel %vm518, %v503, %v511
    %v521 = vsel %vm518, %v505, %v513
    %v522 = vsel %vm518, %v507, %v515
    %v523 = vsel %vm518, %v493, %v501
    %v524 = vsel %vm518, %v495, %v503
    %v525 = vsel %vm518, %v497, %v505
    %v526 = vsel %vm518, %v499, %v507
    %v527 = vsel %vm518, %v485, %v493
    %v528 = vsel %vm518, %v487, %v495
    %v529 = vsel %vm518, %v489, %v497
    %v530 = vsel %vm518, %v491, %v499
    %v531 = vsel %vm518, %v509, %v485
    %v532 = vsel %vm518, %v511, %v487
    %v533 = vsel %vm518, %v513, %v489
    %v534 = vsel %vm518, %v515, %v491
    %v535 = vld [vmem:[#allocation2] sm:$0xff]
    %v536 = vld [vmem:[#allocation2 + $0x8] sm:$0xff]
    %v537 = vld [vmem:[#allocation2 + $0x10] sm:$0xff]
    %v538 = vld [vmem:[#allocation2 + $0x18] sm:$0xff]
    %v539 = vld [vmem:[#allocation2 + $0x20] sm:$0xff]
    %v540 = vld [vmem:[#allocation2 + $0x28] sm:$0xff]
    %v541 = vld [vmem:[#allocation2 + $0x30] sm:$0xff]
    %v542 = vld [vmem:[#allocation2 + $0x38] sm:$0xff]
    %v543 = vld [vmem:[#allocation2 + $0x40] sm:$0xff]
    %v544 = vld [vmem:[#allocation2 + $0x48] sm:$0xff]
    %v545 = vld [vmem:[#allocation2 + $0x50] sm:$0xff]
    %v546 = vld [vmem:[#allocation2 + $0x58] sm:$0xff]
    %v547 = vld [vmem:[#allocation2 + $0x60] sm:$0xff]
    %v548 = vld [vmem:[#allocation2 + $0x68] sm:$0xff]
    %v549 = vld [vmem:[#allocation2 + $0x70] sm:$0xff]
    %v550 = vld [vmem:[#allocation2 + $0x78] sm:$0xff]
    %v551 = vmul.f32 %v531, %v535
    %v552 = vmul.f32 %v527, %v536
    %v553 = vmul.f32 %v523, %v537
    %v554 = vmul.f32 %v519, %v538
    %v555 = vmul.f32 %v532, %v539
    %v556 = vmul.f32 %v528, %v540
    %v557 = vmul.f32 %v524, %v541
    %v558 = vmul.f32 %v520, %v542
    %v559 = vmul.f32 %v533, %v543
    %v560 = vmul.f32 %v529, %v544
    %v561 = vmul.f32 %v525, %v545
    %v562 = vmul.f32 %v521, %v546
    %v563 = vmul.f32 %v534, %v547
    %v564 = vmul.f32 %v530, %v548
    %v565 = vmul.f32 %v526, %v549
    %v566 = vmul.f32 %v522, %v550
    %v567 = vadd.f32 %v468, %v551
    %v568 = vadd.f32 %v469, %v552
    %v569 = vadd.f32 %v470, %v553
    %v570 = vadd.f32 %v471, %v554
    %v571 = vadd.f32 %v472, %v555
    %v572 = vadd.f32 %v473, %v556
    %v573 = vadd.f32 %v474, %v557
    %v574 = vadd.f32 %v475, %v558
    %v575 = vadd.f32 %v476, %v559
    %v576 = vadd.f32 %v477, %v560
    %v577 = vadd.f32 %v478, %v561
    %v578 = vadd.f32 %v479, %v562
    %v579 = vadd.f32 %v480, %v563
    %v580 = vadd.f32 %v481, %v564
    %v581 = vadd.f32 %v482, %v565
    %v582 = vadd.f32 %v483, %v566
    %583 = vrot.lane.b32.xlu0 %v402, 16
    %v584 = vpop.permute.xlu0 %583
    %585 = vrot.lane.b32.xlu0 %v406, 16
    %v586 = vpop.permute.xlu0 %585
    %587 = vrot.lane.b32.xlu0 %v410, 16
    %v588 = vpop.permute.xlu0 %587
    %589 = vrot.lane.b32.xlu0 %v414, 16
    %v590 = vpop.permute.xlu0 %589
    %591 = vrot.lane.b32.xlu0 %v403, 16
    %v592 = vpop.permute.xlu0 %591
    %593 = vrot.lane.b32.xlu0 %v407, 16
    %v594 = vpop.permute.xlu0 %593
    %595 = vrot.lane.b32.xlu0 %v411, 16
    %v596 = vpop.permute.xlu0 %595
    %597 = vrot.lane.b32.xlu0 %v415, 16
    %v598 = vpop.permute.xlu0 %597
    %599 = vrot.lane.b32.xlu0 %v404, 16
    %v600 = vpop.permute.xlu0 %599
    %601 = vrot.lane.b32.xlu0 %v408, 16
    %v602 = vpop.permute.xlu0 %601
    %603 = vrot.lane.b32.xlu0 %v412, 16
    %v604 = vpop.permute.xlu0 %603
    %605 = vrot.lane.b32.xlu0 %v416, 16
    %v606 = vpop.permute.xlu0 %605
    %607 = vrot.lane.b32.xlu0 %v405, 16
    %v608 = vpop.permute.xlu0 %607
    %609 = vrot.lane.b32.xlu0 %v409, 16
    %v610 = vpop.permute.xlu0 %609
    %611 = vrot.lane.b32.xlu0 %v413, 16
    %v612 = vpop.permute.xlu0 %611
    %613 = vrot.lane.b32.xlu0 %v417, 16
    %v614 = vpop.permute.xlu0 %613
    %vm615 = vcmp.lt.s32.totalorder %v517, 16
    %v616 = vsel %vm615, %v600, %v608
    %v617 = vsel %vm615, %v602, %v610
    %v618 = vsel %vm615, %v604, %v612
    %v619 = vsel %vm615, %v606, %v614
    %v620 = vsel %vm615, %v592, %v600
    %v621 = vsel %vm615, %v594, %v602
    %v622 = vsel %vm615, %v596, %v604
    %v623 = vsel %vm615, %v598, %v606
    %v624 = vsel %vm615, %v584, %v592
    %v625 = vsel %vm615, %v586, %v594
    %v626 = vsel %vm615, %v588, %v596
    %v627 = vsel %vm615, %v590, %v598
    %v628 = vsel %vm615, %v608, %v584
    %v629 = vsel %vm615, %v610, %v586
    %v630 = vsel %vm615, %v612, %v588
    %v631 = vsel %vm615, %v614, %v590
    %s632 = scalar_lea.vmem [#allocation2], 128
    %v633 = vld [vmem:[%s632] sm:$0xff]
    %v634 = vld [vmem:[%s632 + $0x8] sm:$0xff]
    %v635 = vld [vmem:[%s632 + $0x10] sm:$0xff]
    %v636 = vld [vmem:[%s632 + $0x18] sm:$0xff]
    %v637 = vld [vmem:[%s632 + $0x20] sm:$0xff]
    %v638 = vld [vmem:[%s632 + $0x28] sm:$0xff]
    %v639 = vld [vmem:[%s632 + $0x30] sm:$0xff]
    %v640 = vld [vmem:[%s632 + $0x38] sm:$0xff]
    %v641 = vld [vmem:[%s632 + $0x40] sm:$0xff]
    %v642 = vld [vmem:[%s632 + $0x48] sm:$0xff]
    %v643 = vld [vmem:[%s632 + $0x50] sm:$0xff]
    %v644 = vld [vmem:[%s632 + $0x58] sm:$0xff]
    %v645 = vld [vmem:[%s632 + $0x60] sm:$0xff]
    %v646 = vld [vmem:[%s632 + $0x68] sm:$0xff]
    %v647 = vld [vmem:[%s632 + $0x70] sm:$0xff]
    %v648 = vld [vmem:[%s632 + $0x78] sm:$0xff]
    %v649 = vmul.f32 %v628, %v633
    %v650 = vmul.f32 %v624, %v634
    %v651 = vmul.f32 %v620, %v635
    %v652 = vmul.f32 %v616, %v636
    %v653 = vmul.f32 %v629, %v637
    %v654 = vmul.f32 %v625, %v638
    %v655 = vmul.f32 %v621, %v639
    %v656 = vmul.f32 %v617, %v640
    %v657 = vmul.f32 %v630, %v641
    %v658 = vmul.f32 %v626, %v642
    %v659 = vmul.f32 %v622, %v643
    %v660 = vmul.f32 %v618, %v644
    %v661 = vmul.f32 %v631, %v645
    %v662 = vmul.f32 %v627, %v646
    %v663 = vmul.f32 %v623, %v647
    %v664 = vmul.f32 %v619, %v648
    %v665 = vadd.f32 %v567, %v649
    %v666 = vadd.f32 %v568, %v650
    %v667 = vadd.f32 %v569, %v651
    %v668 = vadd.f32 %v570, %v652
    %v669 = vadd.f32 %v571, %v653
    %v670 = vadd.f32 %v572, %v654
    %v671 = vadd.f32 %v573, %v655
    %v672 = vadd.f32 %v574, %v656
    %v673 = vadd.f32 %v575, %v657
    %v674 = vadd.f32 %v576, %v658
    %v675 = vadd.f32 %v577, %v659
    %v676 = vadd.f32 %v578, %v660
    %v677 = vadd.f32 %v579, %v661
    %v678 = vadd.f32 %v580, %v662
    %v679 = vadd.f32 %v581, %v663
    %v680 = vadd.f32 %v582, %v664
    %681 = vrot.lane.b32.xlu0 %v402, 15
    %v682 = vpop.permute.xlu0 %681
    %683 = vrot.lane.b32.xlu0 %v406, 15
    %v684 = vpop.permute.xlu0 %683
    %685 = vrot.lane.b32.xlu0 %v410, 15
    %v686 = vpop.permute.xlu0 %685
    %687 = vrot.lane.b32.xlu0 %v414, 15
    %v688 = vpop.permute.xlu0 %687
    %689 = vrot.lane.b32.xlu0 %v403, 15
    %v690 = vpop.permute.xlu0 %689
    %691 = vrot.lane.b32.xlu0 %v407, 15
    %v692 = vpop.permute.xlu0 %691
    %693 = vrot.lane.b32.xlu0 %v411, 15
    %v694 = vpop.permute.xlu0 %693
    %695 = vrot.lane.b32.xlu0 %v415, 15
    %v696 = vpop.permute.xlu0 %695
    %697 = vrot.lane.b32.xlu0 %v404, 15
    %v698 = vpop.permute.xlu0 %697
    %699 = vrot.lane.b32.xlu0 %v408, 15
    %v700 = vpop.permute.xlu0 %699
    %701 = vrot.lane.b32.xlu0 %v412, 15
    %v702 = vpop.permute.xlu0 %701
    %703 = vrot.lane.b32.xlu0 %v416, 15
    %v704 = vpop.permute.xlu0 %703
    %705 = vrot.lane.b32.xlu0 %v405, 15
    %v706 = vpop.permute.xlu0 %705
    %707 = vrot.lane.b32.xlu0 %v409, 15
    %v708 = vpop.permute.xlu0 %707
    %709 = vrot.lane.b32.xlu0 %v413, 15
    %v710 = vpop.permute.xlu0 %709
    %711 = vrot.lane.b32.xlu0 %v417, 15
    %v712 = vpop.permute.xlu0 %711
    %vm713 = vcmp.lt.s32.totalorder %v517, 15
    %v714 = vsel %vm713, %v698, %v706
    %v715 = vsel %vm713, %v700, %v708
    %v716 = vsel %vm713, %v702, %v710
    %v717 = vsel %vm713, %v704, %v712
    %v718 = vsel %vm713, %v690, %v698
    %v719 = vsel %vm713, %v692, %v700
    %v720 = vsel %vm713, %v694, %v702
    %v721 = vsel %vm713, %v696, %v704
    %v722 = vsel %vm713, %v682, %v690
    %v723 = vsel %vm713, %v684, %v692
    %v724 = vsel %vm713, %v686, %v694
    %v725 = vsel %vm713, %v688, %v696
    %v726 = vsel %vm713, %v706, %v682
    %v727 = vsel %vm713, %v708, %v684
    %v728 = vsel %vm713, %v710, %v686
    %v729 = vsel %vm713, %v712, %v688
    %s730 = scalar_lea.vmem [#allocation2], 256
    %v731 = vld [vmem:[%s730] sm:$0xff]
    %v732 = vld [vmem:[%s730 + $0x8] sm:$0xff]
    %v733 = vld [vmem:[%s730 + $0x10] sm:$0xff]
    %v734 = vld [vmem:[%s730 + $0x18] sm:$0xff]
    %v735 = vld [vmem:[%s730 + $0x20] sm:$0xff]
    %v736 = vld [vmem:[%s730 + $0x28] sm:$0xff]
    %v737 = vld [vmem:[%s730 + $0x30] sm:$0xff]
    %v738 = vld [vmem:[%s730 + $0x38] sm:$0xff]
    %v739 = vld [vmem:[%s730 + $0x40] sm:$0xff]
    %v740 = vld [vmem:[%s730 + $0x48] sm:$0xff]
    %v741 = vld [vmem:[%s730 + $0x50] sm:$0xff]
    %v742 = vld [vmem:[%s730 + $0x58] sm:$0xff]
    %v743 = vld [vmem:[%s730 + $0x60] sm:$0xff]
    %v744 = vld [vmem:[%s730 + $0x68] sm:$0xff]
    %v745 = vld [vmem:[%s730 + $0x70] sm:$0xff]
    %v746 = vld [vmem:[%s730 + $0x78] sm:$0xff]
    %v747 = vmul.f32 %v726, %v731
    %v748 = vmul.f32 %v722, %v732
    %v749 = vmul.f32 %v718, %v733
    %v750 = vmul.f32 %v714, %v734
    %v751 = vmul.f32 %v727, %v735
    %v752 = vmul.f32 %v723, %v736
    %v753 = vmul.f32 %v719, %v737
    %v754 = vmul.f32 %v715, %v738
    %v755 = vmul.f32 %v728, %v739
    %v756 = vmul.f32 %v724, %v740
    %v757 = vmul.f32 %v720, %v741
    %v758 = vmul.f32 %v716, %v742
    %v759 = vmul.f32 %v729, %v743
    %v760 = vmul.f32 %v725, %v744
    %v761 = vmul.f32 %v721, %v745
    %v762 = vmul.f32 %v717, %v746
    %v763 = vadd.f32 %v665, %v747
    %v764 = vadd.f32 %v666, %v748
    %v765 = vadd.f32 %v667, %v749
    %v766 = vadd.f32 %v668, %v750
    %v767 = vadd.f32 %v669, %v751
    %v768 = vadd.f32 %v670, %v752
    %v769 = vadd.f32 %v671, %v753
    %v770 = vadd.f32 %v672, %v754
    %v771 = vadd.f32 %v673, %v755
    %v772 = vadd.f32 %v674, %v756
    %v773 = vadd.f32 %v675, %v757
    %v774 = vadd.f32 %v676, %v758
    %v775 = vadd.f32 %v677, %v759
    %v776 = vadd.f32 %v678, %v760
    %v777 = vadd.f32 %v679, %v761
    %v778 = vadd.f32 %v680, %v762
    %779 = vrot.lane.b32.xlu0 %v402, 1
    %v780 = vpop.permute.xlu0 %779
    %781 = vrot.lane.b32.xlu0 %v406, 1
    %v782 = vpop.permute.xlu0 %781
    %783 = vrot.lane.b32.xlu0 %v410, 1
    %v784 = vpop.permute.xlu0 %783
    %785 = vrot.lane.b32.xlu0 %v414, 1
    %v786 = vpop.permute.xlu0 %785
    %787 = vrot.lane.b32.xlu0 %v403, 1
    %v788 = vpop.permute.xlu0 %787
    %789 = vrot.lane.b32.xlu0 %v407, 1
    %v790 = vpop.permute.xlu0 %789
    %791 = vrot.lane.b32.xlu0 %v411, 1
    %v792 = vpop.permute.xlu0 %791
    %793 = vrot.lane.b32.xlu0 %v415, 1
    %v794 = vpop.permute.xlu0 %793
    %795 = vrot.lane.b32.xlu0 %v404, 1
    %v796 = vpop.permute.xlu0 %795
    %797 = vrot.lane.b32.xlu0 %v408, 1
    %v798 = vpop.permute.xlu0 %797
    %799 = vrot.lane.b32.xlu0 %v412, 1
    %v800 = vpop.permute.xlu0 %799
    %801 = vrot.lane.b32.xlu0 %v416, 1
    %v802 = vpop.permute.xlu0 %801
    %803 = vrot.lane.b32.xlu0 %v405, 1
    %v804 = vpop.permute.xlu0 %803
    %805 = vrot.lane.b32.xlu0 %v409, 1
    %v806 = vpop.permute.xlu0 %805
    %807 = vrot.lane.b32.xlu0 %v413, 1
    %v808 = vpop.permute.xlu0 %807
    %809 = vrot.lane.b32.xlu0 %v417, 1
    %v810 = vpop.permute.xlu0 %809
    %vm811 = vcmp.lt.s32.totalorder %v517, 1
    %v812 = vsel %vm811, %v796, %v804
    %v813 = vsel %vm811, %v798, %v806
    %v814 = vsel %vm811, %v800, %v808
    %v815 = vsel %vm811, %v802, %v810
    %v816 = vsel %vm811, %v788, %v796
    %v817 = vsel %vm811, %v790, %v798
    %v818 = vsel %vm811, %v792, %v800
    %v819 = vsel %vm811, %v794, %v802
    %v820 = vsel %vm811, %v780, %v788
    %v821 = vsel %vm811, %v782, %v790
    %v822 = vsel %vm811, %v784, %v792
    %v823 = vsel %vm811, %v786, %v794
    %v824 = vsel %vm811, %v804, %v780
    %v825 = vsel %vm811, %v806, %v782
    %v826 = vsel %vm811, %v808, %v784
    %v827 = vsel %vm811, %v810, %v786
    %s828 = scalar_lea.vmem [#allocation2], 384
    %v829 = vld [vmem:[%s828] sm:$0xff]
    %v830 = vld [vmem:[%s828 + $0x8] sm:$0xff]
    %v831 = vld [vmem:[%s828 + $0x10] sm:$0xff]
    %v832 = vld [vmem:[%s828 + $0x18] sm:$0xff]
    %v833 = vld [vmem:[%s828 + $0x20] sm:$0xff]
    %v834 = vld [vmem:[%s828 + $0x28] sm:$0xff]
    %v835 = vld [vmem:[%s828 + $0x30] sm:$0xff]
    %v836 = vld [vmem:[%s828 + $0x38] sm:$0xff]
    %v837 = vld [vmem:[%s828 + $0x40] sm:$0xff]
    %v838 = vld [vmem:[%s828 + $0x48] sm:$0xff]
    %v839 = vld [vmem:[%s828 + $0x50] sm:$0xff]
    %v840 = vld [vmem:[%s828 + $0x58] sm:$0xff]
    %v841 = vld [vmem:[%s828 + $0x60] sm:$0xff]
    %v842 = vld [vmem:[%s828 + $0x68] sm:$0xff]
    %v843 = vld [vmem:[%s828 + $0x70] sm:$0xff]
    %v844 = vld [vmem:[%s828 + $0x78] sm:$0xff]
    %v845 = vmul.f32 %v824, %v829
    %v846 = vmul.f32 %v820, %v830
    %v847 = vmul.f32 %v816, %v831
    %v848 = vmul.f32 %v812, %v832
    %v849 = vmul.f32 %v825, %v833
    %v850 = vmul.f32 %v821, %v834
    %v851 = vmul.f32 %v817, %v835
    %v852 = vmul.f32 %v813, %v836
    %v853 = vmul.f32 %v826, %v837
    %v854 = vmul.f32 %v822, %v838
    %v855 = vmul.f32 %v818, %v839
    %v856 = vmul.f32 %v814, %v840
    %v857 = vmul.f32 %v827, %v841
    %v858 = vmul.f32 %v823, %v842
    %v859 = vmul.f32 %v819, %v843
    %v860 = vmul.f32 %v815, %v844
    %v861 = vadd.f32 %v763, %v845
    %v862 = vadd.f32 %v764, %v846
    %v863 = vadd.f32 %v765, %v847
    %v864 = vadd.f32 %v766, %v848
    %v865 = vadd.f32 %v767, %v849
    %v866 = vadd.f32 %v768, %v850
    %v867 = vadd.f32 %v769, %v851
    %v868 = vadd.f32 %v770, %v852
    %v869 = vadd.f32 %v771, %v853
    %v870 = vadd.f32 %v772, %v854
    %v871 = vadd.f32 %v773, %v855
    %v872 = vadd.f32 %v774, %v856
    %v873 = vadd.f32 %v775, %v857
    %v874 = vadd.f32 %v776, %v858
    %v875 = vadd.f32 %v777, %v859
    %v876 = vadd.f32 %v778, %v860
    %877 = vrot.lane.b32.xlu0 %v402, 127
    %v878 = vpop.permute.xlu0 %877
    %879 = vrot.lane.b32.xlu0 %v406, 127
    %v880 = vpop.permute.xlu0 %879
    %881 = vrot.lane.b32.xlu0 %v410, 127
    %v882 = vpop.permute.xlu0 %881
    %883 = vrot.lane.b32.xlu0 %v414, 127
    %v884 = vpop.permute.xlu0 %883
    %885 = vrot.lane.b32.xlu0 %v403, 127
    %v886 = vpop.permute.xlu0 %885
    %887 = vrot.lane.b32.xlu0 %v407, 127
    %v888 = vpop.permute.xlu0 %887
    %889 = vrot.lane.b32.xlu0 %v411, 127
    %v890 = vpop.permute.xlu0 %889
    %891 = vrot.lane.b32.xlu0 %v415, 127
    %v892 = vpop.permute.xlu0 %891
    %893 = vrot.lane.b32.xlu0 %v404, 127
    %v894 = vpop.permute.xlu0 %893
    %895 = vrot.lane.b32.xlu0 %v408, 127
    %v896 = vpop.permute.xlu0 %895
    %897 = vrot.lane.b32.xlu0 %v412, 127
    %v898 = vpop.permute.xlu0 %897
    %899 = vrot.lane.b32.xlu0 %v416, 127
    %v900 = vpop.permute.xlu0 %899
    %901 = vrot.lane.b32.xlu0 %v405, 127
    %v902 = vpop.permute.xlu0 %901
    %903 = vrot.lane.b32.xlu0 %v409, 127
    %v904 = vpop.permute.xlu0 %903
    %905 = vrot.lane.b32.xlu0 %v413, 127
    %v906 = vpop.permute.xlu0 %905
    %907 = vrot.lane.b32.xlu0 %v417, 127
    %v908 = vpop.permute.xlu0 %907
    %vm909 = vcmp.lt.s32.totalorder %v517, 127
    %v910 = vsel %vm909, %v894, %v902
    %v911 = vsel %vm909, %v896, %v904
    %v912 = vsel %vm909, %v898, %v906
    %v913 = vsel %vm909, %v900, %v908
    %v914 = vsel %vm909, %v886, %v894
    %v915 = vsel %vm909, %v888, %v896
    %v916 = vsel %vm909, %v890, %v898
    %v917 = vsel %vm909, %v892, %v900
    %v918 = vsel %vm909, %v878, %v886
    %v919 = vsel %vm909, %v880, %v888
    %v920 = vsel %vm909, %v882, %v890
    %v921 = vsel %vm909, %v884, %v892
    %v922 = vsel %vm909, %v902, %v878
    %v923 = vsel %vm909, %v904, %v880
    %v924 = vsel %vm909, %v906, %v882
    %v925 = vsel %vm909, %v908, %v884
    %s926 = scalar_lea.vmem [#allocation2], 640
    %v927 = vld [vmem:[%s926] sm:$0xff]
    %v928 = vld [vmem:[%s926 + $0x8] sm:$0xff]
    %v929 = vld [vmem:[%s926 + $0x10] sm:$0xff]
    %v930 = vld [vmem:[%s926 + $0x18] sm:$0xff]
    %v931 = vld [vmem:[%s926 + $0x20] sm:$0xff]
    %v932 = vld [vmem:[%s926 + $0x28] sm:$0xff]
    %v933 = vld [vmem:[%s926 + $0x30] sm:$0xff]
    %v934 = vld [vmem:[%s926 + $0x38] sm:$0xff]
    %v935 = vld [vmem:[%s926 + $0x40] sm:$0xff]
    %v936 = vld [vmem:[%s926 + $0x48] sm:$0xff]
    %v937 = vld [vmem:[%s926 + $0x50] sm:$0xff]
    %v938 = vld [vmem:[%s926 + $0x58] sm:$0xff]
    %v939 = vld [vmem:[%s926 + $0x60] sm:$0xff]
    %v940 = vld [vmem:[%s926 + $0x68] sm:$0xff]
    %v941 = vld [vmem:[%s926 + $0x70] sm:$0xff]
    %v942 = vld [vmem:[%s926 + $0x78] sm:$0xff]
    %v943 = vmul.f32 %v918, %v927
    %v944 = vmul.f32 %v914, %v928
    %v945 = vmul.f32 %v910, %v929
    %v946 = vmul.f32 %v922, %v930
    %v947 = vmul.f32 %v919, %v931
    %v948 = vmul.f32 %v915, %v932
    %v949 = vmul.f32 %v911, %v933
    %v950 = vmul.f32 %v923, %v934
    %v951 = vmul.f32 %v920, %v935
    %v952 = vmul.f32 %v916, %v936
    %v953 = vmul.f32 %v912, %v937
    %v954 = vmul.f32 %v924, %v938
    %v955 = vmul.f32 %v921, %v939
    %v956 = vmul.f32 %v917, %v940
    %v957 = vmul.f32 %v913, %v941
    %v958 = vmul.f32 %v925, %v942
    %v959 = vadd.f32 %v861, %v943
    %v960 = vadd.f32 %v862, %v944
    %v961 = vadd.f32 %v863, %v945
    %v962 = vadd.f32 %v864, %v946
    %v963 = vadd.f32 %v865, %v947
    %v964 = vadd.f32 %v866, %v948
    %v965 = vadd.f32 %v867, %v949
    %v966 = vadd.f32 %v868, %v950
    %v967 = vadd.f32 %v869, %v951
    %v968 = vadd.f32 %v870, %v952
    %v969 = vadd.f32 %v871, %v953
    %v970 = vadd.f32 %v872, %v954
    %v971 = vadd.f32 %v873, %v955
    %v972 = vadd.f32 %v874, %v956
    %v973 = vadd.f32 %v875, %v957
    %v974 = vadd.f32 %v876, %v958
    %975 = vrot.lane.b32.xlu0 %v402, 113
    %v976 = vpop.permute.xlu0 %975
    %977 = vrot.lane.b32.xlu0 %v406, 113
    %v978 = vpop.permute.xlu0 %977
    %979 = vrot.lane.b32.xlu0 %v410, 113
    %v980 = vpop.permute.xlu0 %979
    %981 = vrot.lane.b32.xlu0 %v414, 113
    %v982 = vpop.permute.xlu0 %981
    %983 = vrot.lane.b32.xlu0 %v403, 113
    %v984 = vpop.permute.xlu0 %983
    %985 = vrot.lane.b32.xlu0 %v407, 113
    %v986 = vpop.permute.xlu0 %985
    %987 = vrot.lane.b32.xlu0 %v411, 113
    %v988 = vpop.permute.xlu0 %987
    %989 = vrot.lane.b32.xlu0 %v415, 113
    %v990 = vpop.permute.xlu0 %989
    %991 = vrot.lane.b32.xlu0 %v404, 113
    %v992 = vpop.permute.xlu0 %991
    %993 = vrot.lane.b32.xlu0 %v408, 113
    %v994 = vpop.permute.xlu0 %993
    %995 = vrot.lane.b32.xlu0 %v412, 113
    %v996 = vpop.permute.xlu0 %995
    %997 = vrot.lane.b32.xlu0 %v416, 113
    %v998 = vpop.permute.xlu0 %997
    %999 = vrot.lane.b32.xlu0 %v405, 113
    %v1000 = vpop.permute.xlu0 %999
    %1001 = vrot.lane.b32.xlu0 %v409, 113
    %v1002 = vpop.permute.xlu0 %1001
    %1003 = vrot.lane.b32.xlu0 %v413, 113
    %v1004 = vpop.permute.xlu0 %1003
    %1005 = vrot.lane.b32.xlu0 %v417, 113
    %v1006 = vpop.permute.xlu0 %1005
    %vm1007 = vcmp.lt.s32.totalorder %v517, 113
    %v1008 = vsel %vm1007, %v992, %v1000
    %v1009 = vsel %vm1007, %v994, %v1002
    %v1010 = vsel %vm1007, %v996, %v1004
    %v1011 = vsel %vm1007, %v998, %v1006
    %v1012 = vsel %vm1007, %v984, %v992
    %v1013 = vsel %vm1007, %v986, %v994
    %v1014 = vsel %vm1007, %v988, %v996
    %v1015 = vsel %vm1007, %v990, %v998
    %v1016 = vsel %vm1007, %v976, %v984
    %v1017 = vsel %vm1007, %v978, %v986
    %v1018 = vsel %vm1007, %v980, %v988
    %v1019 = vsel %vm1007, %v982, %v990
    %v1020 = vsel %vm1007, %v1000, %v976
    %v1021 = vsel %vm1007, %v1002, %v978
    %v1022 = vsel %vm1007, %v1004, %v980
    %v1023 = vsel %vm1007, %v1006, %v982
    %s1024 = scalar_lea.vmem [#allocation2], 768
    %v1025 = vld [vmem:[%s1024] sm:$0xff]
    %v1026 = vld [vmem:[%s1024 + $0x8] sm:$0xff]
    %v1027 = vld [vmem:[%s1024 + $0x10] sm:$0xff]
    %v1028 = vld [vmem:[%s1024 + $0x18] sm:$0xff]
    %v1029 = vld [vmem:[%s1024 + $0x20] sm:$0xff]
    %v1030 = vld [vmem:[%s1024 + $0x28] sm:$0xff]
    %v1031 = vld [vmem:[%s1024 + $0x30] sm:$0xff]
    %v1032 = vld [vmem:[%s1024 + $0x38] sm:$0xff]
    %v1033 = vld [vmem:[%s1024 + $0x40] sm:$0xff]
    %v1034 = vld [vmem:[%s1024 + $0x48] sm:$0xff]
    %v1035 = vld [vmem:[%s1024 + $0x50] sm:$0xff]
    %v1036 = vld [vmem:[%s1024 + $0x58] sm:$0xff]
    %v1037 = vld [vmem:[%s1024 + $0x60] sm:$0xff]
    %v1038 = vld [vmem:[%s1024 + $0x68] sm:$0xff]
    %v1039 = vld [vmem:[%s1024 + $0x70] sm:$0xff]
    %v1040 = vld [vmem:[%s1024 + $0x78] sm:$0xff]
    %v1041 = vmul.f32 %v1016, %v1025
    %v1042 = vmul.f32 %v1012, %v1026
    %v1043 = vmul.f32 %v1008, %v1027
    %v1044 = vmul.f32 %v1020, %v1028
    %v1045 = vmul.f32 %v1017, %v1029
    %v1046 = vmul.f32 %v1013, %v1030
    %v1047 = vmul.f32 %v1009, %v1031
    %v1048 = vmul.f32 %v1021, %v1032
    %v1049 = vmul.f32 %v1018, %v1033
    %v1050 = vmul.f32 %v1014, %v1034
    %v1051 = vmul.f32 %v1010, %v1035
    %v1052 = vmul.f32 %v1022, %v1036
    %v1053 = vmul.f32 %v1019, %v1037
    %v1054 = vmul.f32 %v1015, %v1038
    %v1055 = vmul.f32 %v1011, %v1039
    %v1056 = vmul.f32 %v1023, %v1040
    %v1057 = vadd.f32 %v959, %v1041
    %v1058 = vadd.f32 %v960, %v1042
    %v1059 = vadd.f32 %v961, %v1043
    %v1060 = vadd.f32 %v962, %v1044
    %v1061 = vadd.f32 %v963, %v1045
    %v1062 = vadd.f32 %v964, %v1046
    %v1063 = vadd.f32 %v965, %v1047
    %v1064 = vadd.f32 %v966, %v1048
    %v1065 = vadd.f32 %v967, %v1049
    %v1066 = vadd.f32 %v968, %v1050
    %v1067 = vadd.f32 %v969, %v1051
    %v1068 = vadd.f32 %v970, %v1052
    %v1069 = vadd.f32 %v971, %v1053
    %v1070 = vadd.f32 %v972, %v1054
    %v1071 = vadd.f32 %v973, %v1055
    %v1072 = vadd.f32 %v974, %v1056
    %1073 = vrot.lane.b32.xlu0 %v402, 112
    %v1074 = vpop.permute.xlu0 %1073
    %1075 = vrot.lane.b32.xlu0 %v406, 112
    %v1076 = vpop.permute.xlu0 %1075
    %1077 = vrot.lane.b32.xlu0 %v410, 112
    %v1078 = vpop.permute.xlu0 %1077
    %1079 = vrot.lane.b32.xlu0 %v414, 112
    %v1080 = vpop.permute.xlu0 %1079
    %1081 = vrot.lane.b32.xlu0 %v403, 112
    %v1082 = vpop.permute.xlu0 %1081
    %1083 = vrot.lane.b32.xlu0 %v407, 112
    %v1084 = vpop.permute.xlu0 %1083
    %1085 = vrot.lane.b32.xlu0 %v411, 112
    %v1086 = vpop.permute.xlu0 %1085
    %1087 = vrot.lane.b32.xlu0 %v415, 112
    %v1088 = vpop.permute.xlu0 %1087
    %1089 = vrot.lane.b32.xlu0 %v404, 112
    %v1090 = vpop.permute.xlu0 %1089
    %1091 = vrot.lane.b32.xlu0 %v408, 112
    %v1092 = vpop.permute.xlu0 %1091
    %1093 = vrot.lane.b32.xlu0 %v412, 112
    %v1094 = vpop.permute.xlu0 %1093
    %1095 = vrot.lane.b32.xlu0 %v416, 112
    %v1096 = vpop.permute.xlu0 %1095
    %1097 = vrot.lane.b32.xlu0 %v405, 112
    %v1098 = vpop.permute.xlu0 %1097
    %1099 = vrot.lane.b32.xlu0 %v409, 112
    %v1100 = vpop.permute.xlu0 %1099
    %1101 = vrot.lane.b32.xlu0 %v413, 112
    %v1102 = vpop.permute.xlu0 %1101
    %1103 = vrot.lane.b32.xlu0 %v417, 112
    %v1104 = vpop.permute.xlu0 %1103
    %vm1105 = vcmp.lt.s32.totalorder %v517, 112
    %v1106 = vsel %vm1105, %v1090, %v1098
    %v1107 = vsel %vm1105, %v1092, %v1100
    %v1108 = vsel %vm1105, %v1094, %v1102
    %v1109 = vsel %vm1105, %v1096, %v1104
    %v1110 = vsel %vm1105, %v1082, %v1090
    %v1111 = vsel %vm1105, %v1084, %v1092
    %v1112 = vsel %vm1105, %v1086, %v1094
    %v1113 = vsel %vm1105, %v1088, %v1096
    %v1114 = vsel %vm1105, %v1074, %v1082
    %v1115 = vsel %vm1105, %v1076, %v1084
    %v1116 = vsel %vm1105, %v1078, %v1086
    %v1117 = vsel %vm1105, %v1080, %v1088
    %v1118 = vsel %vm1105, %v1098, %v1074
    %v1119 = vsel %vm1105, %v1100, %v1076
    %v1120 = vsel %vm1105, %v1102, %v1078
    %v1121 = vsel %vm1105, %v1104, %v1080
    %s1122 = scalar_lea.vmem [#allocation2], 896
    %v1123 = vld [vmem:[%s1122] sm:$0xff]
    %v1124 = vld [vmem:[%s1122 + $0x8] sm:$0xff]
    %v1125 = vld [vmem:[%s1122 + $0x10] sm:$0xff]
    %v1126 = vld [vmem:[%s1122 + $0x18] sm:$0xff]
    %v1127 = vld [vmem:[%s1122 + $0x20] sm:$0xff]
    %v1128 = vld [vmem:[%s1122 + $0x28] sm:$0xff]
    %v1129 = vld [vmem:[%s1122 + $0x30] sm:$0xff]
    %v1130 = vld [vmem:[%s1122 + $0x38] sm:$0xff]
    %v1131 = vld [vmem:[%s1122 + $0x40] sm:$0xff]
    %v1132 = vld [vmem:[%s1122 + $0x48] sm:$0xff]
    %v1133 = vld [vmem:[%s1122 + $0x50] sm:$0xff]
    %v1134 = vld [vmem:[%s1122 + $0x58] sm:$0xff]
    %v1135 = vld [vmem:[%s1122 + $0x60] sm:$0xff]
    %v1136 = vld [vmem:[%s1122 + $0x68] sm:$0xff]
    %v1137 = vld [vmem:[%s1122 + $0x70] sm:$0xff]
    %v1138 = vld [vmem:[%s1122 + $0x78] sm:$0xff]
    %v1139 = vmul.f32 %v1114, %v1123
    %v1140 = vmul.f32 %v1110, %v1124
    %v1141 = vmul.f32 %v1106, %v1125
    %v1142 = vmul.f32 %v1118, %v1126
    %v1143 = vmul.f32 %v1115, %v1127
    %v1144 = vmul.f32 %v1111, %v1128
    %v1145 = vmul.f32 %v1107, %v1129
    %v1146 = vmul.f32 %v1119, %v1130
    %v1147 = vmul.f32 %v1116, %v1131
    %v1148 = vmul.f32 %v1112, %v1132
    %v1149 = vmul.f32 %v1108, %v1133
    %v1150 = vmul.f32 %v1120, %v1134
    %v1151 = vmul.f32 %v1117, %v1135
    %v1152 = vmul.f32 %v1113, %v1136
    %v1153 = vmul.f32 %v1109, %v1137
    %v1154 = vmul.f32 %v1121, %v1138
    %v1155 = vadd.f32 %v1057, %v1139
    %v1156 = vadd.f32 %v1058, %v1140
    %v1157 = vadd.f32 %v1059, %v1141
    %v1158 = vadd.f32 %v1060, %v1142
    %v1159 = vadd.f32 %v1061, %v1143
    %v1160 = vadd.f32 %v1062, %v1144
    %v1161 = vadd.f32 %v1063, %v1145
    %v1162 = vadd.f32 %v1064, %v1146
    %v1163 = vadd.f32 %v1065, %v1147
    %v1164 = vadd.f32 %v1066, %v1148
    %v1165 = vadd.f32 %v1067, %v1149
    %v1166 = vadd.f32 %v1068, %v1150
    %v1167 = vadd.f32 %v1069, %v1151
    %v1168 = vadd.f32 %v1070, %v1152
    %v1169 = vadd.f32 %v1071, %v1153
    %v1170 = vadd.f32 %v1072, %v1154
    %1171 = vrot.lane.b32.xlu0 %v402, 111
    %v1172 = vpop.permute.xlu0 %1171
    %1173 = vrot.lane.b32.xlu0 %v406, 111
    %v1174 = vpop.permute.xlu0 %1173
    %1175 = vrot.lane.b32.xlu0 %v410, 111
    %v1176 = vpop.permute.xlu0 %1175
    %1177 = vrot.lane.b32.xlu0 %v414, 111
    %v1178 = vpop.permute.xlu0 %1177
    %1179 = vrot.lane.b32.xlu0 %v403, 111
    %v1180 = vpop.permute.xlu0 %1179
    %1181 = vrot.lane.b32.xlu0 %v407, 111
    %v1182 = vpop.permute.xlu0 %1181
    %1183 = vrot.lane.b32.xlu0 %v411, 111
    %v1184 = vpop.permute.xlu0 %1183
    %1185 = vrot.lane.b32.xlu0 %v415, 111
    %v1186 = vpop.permute.xlu0 %1185
    %1187 = vrot.lane.b32.xlu0 %v404, 111
    %v1188 = vpop.permute.xlu0 %1187
    %1189 = vrot.lane.b32.xlu0 %v408, 111
    %v1190 = vpop.permute.xlu0 %1189
    %1191 = vrot.lane.b32.xlu0 %v412, 111
    %v1192 = vpop.permute.xlu0 %1191
    %1193 = vrot.lane.b32.xlu0 %v416, 111
    %v1194 = vpop.permute.xlu0 %1193
    %1195 = vrot.lane.b32.xlu0 %v405, 111
    %v1196 = vpop.permute.xlu0 %1195
    %1197 = vrot.lane.b32.xlu0 %v409, 111
    %v1198 = vpop.permute.xlu0 %1197
    %1199 = vrot.lane.b32.xlu0 %v413, 111
    %v1200 = vpop.permute.xlu0 %1199
    %1201 = vrot.lane.b32.xlu0 %v417, 111
    %v1202 = vpop.permute.xlu0 %1201
    %vm1203 = vcmp.lt.s32.totalorder %v517, 111
    %v1204 = vsel %vm1203, %v1188, %v1196
    %v1205 = vsel %vm1203, %v1190, %v1198
    %v1206 = vsel %vm1203, %v1192, %v1200
    %v1207 = vsel %vm1203, %v1194, %v1202
    %v1208 = vsel %vm1203, %v1180, %v1188
    %v1209 = vsel %vm1203, %v1182, %v1190
    %v1210 = vsel %vm1203, %v1184, %v1192
    %v1211 = vsel %vm1203, %v1186, %v1194
    %v1212 = vsel %vm1203, %v1172, %v1180
    %v1213 = vsel %vm1203, %v1174, %v1182
    %v1214 = vsel %vm1203, %v1176, %v1184
    %v1215 = vsel %vm1203, %v1178, %v1186
    %v1216 = vsel %vm1203, %v1196, %v1172
    %v1217 = vsel %vm1203, %v1198, %v1174
    %v1218 = vsel %vm1203, %v1200, %v1176
    %v1219 = vsel %vm1203, %v1202, %v1178
    %s1220 = scalar_lea.vmem [#allocation2], 1024
    %v1221 = vld [vmem:[%s1220] sm:$0xff]
    %v1222 = vld [vmem:[%s1220 + $0x8] sm:$0xff]
    %v1223 = vld [vmem:[%s1220 + $0x10] sm:$0xff]
    %v1224 = vld [vmem:[%s1220 + $0x18] sm:$0xff]
    %v1225 = vld [vmem:[%s1220 + $0x20] sm:$0xff]
    %v1226 = vld [vmem:[%s1220 + $0x28] sm:$0xff]
    %v1227 = vld [vmem:[%s1220 + $0x30] sm:$0xff]
    %v1228 = vld [vmem:[%s1220 + $0x38] sm:$0xff]
    %v1229 = vld [vmem:[%s1220 + $0x40] sm:$0xff]
    %v1230 = vld [vmem:[%s1220 + $0x48] sm:$0xff]
    %v1231 = vld [vmem:[%s1220 + $0x50] sm:$0xff]
    %v1232 = vld [vmem:[%s1220 + $0x58] sm:$0xff]
    %v1233 = vld [vmem:[%s1220 + $0x60] sm:$0xff]
    %v1234 = vld [vmem:[%s1220 + $0x68] sm:$0xff]
    %v1235 = vld [vmem:[%s1220 + $0x70] sm:$0xff]
    %v1236 = vld [vmem:[%s1220 + $0x78] sm:$0xff]
    %v1237 = vmul.f32 %v1212, %v1221
    %v1238 = vmul.f32 %v1208, %v1222
    %v1239 = vmul.f32 %v1204, %v1223
    %v1240 = vmul.f32 %v1216, %v1224
    %v1241 = vmul.f32 %v1213, %v1225
    %v1242 = vmul.f32 %v1209, %v1226
    %v1243 = vmul.f32 %v1205, %v1227
    %v1244 = vmul.f32 %v1217, %v1228
    %v1245 = vmul.f32 %v1214, %v1229
    %v1246 = vmul.f32 %v1210, %v1230
    %v1247 = vmul.f32 %v1206, %v1231
    %v1248 = vmul.f32 %v1218, %v1232
    %v1249 = vmul.f32 %v1215, %v1233
    %v1250 = vmul.f32 %v1211, %v1234
    %v1251 = vmul.f32 %v1207, %v1235
    %v1252 = vmul.f32 %v1219, %v1236
    %v1253 = vadd.f32 %v1155, %v1237
    %v1254 = vadd.f32 %v1156, %v1238
    %v1255 = vadd.f32 %v1157, %v1239
    %v1256 = vadd.f32 %v1158, %v1240
    %v1257 = vadd.f32 %v1159, %v1241
    %v1258 = vadd.f32 %v1160, %v1242
    %v1259 = vadd.f32 %v1161, %v1243
    %v1260 = vadd.f32 %v1162, %v1244
    %v1261 = vadd.f32 %v1163, %v1245
    %v1262 = vadd.f32 %v1164, %v1246
    %v1263 = vadd.f32 %v1165, %v1247
    %v1264 = vadd.f32 %v1166, %v1248
    %v1265 = vadd.f32 %v1167, %v1249
    %v1266 = vadd.f32 %v1168, %v1250
    %v1267 = vadd.f32 %v1169, %v1251
    %v1268 = vadd.f32 %v1170, %v1252
    %v1269 = vmul.f32 %v1253, 0.5
    %v1270 = vmul.f32 %v1254, 0.5
    %v1271 = vmul.f32 %v1255, 0.5
    %v1272 = vmul.f32 %v1256, 0.5
    %v1273 = vmul.f32 %v1257, 0.5
    %v1274 = vmul.f32 %v1258, 0.5
    %v1275 = vmul.f32 %v1259, 0.5
    %v1276 = vmul.f32 %v1260, 0.5
    %v1277 = vmul.f32 %v1261, 0.5
    %v1278 = vmul.f32 %v1262, 0.5
    %v1279 = vmul.f32 %v1263, 0.5
    %v1280 = vmul.f32 %v1264, 0.5
    %v1281 = vmul.f32 %v1265, 0.5
    %v1282 = vmul.f32 %v1266, 0.5
    %v1283 = vmul.f32 %v1267, 0.5
    %v1284 = vmul.f32 %v1268, 0.5
    %v1285 = vmul.f32 %v1253, %v1253
    %v1286 = vmul.f32 %v1254, %v1254
    %v1287 = vmul.f32 %v1255, %v1255
    %v1288 = vmul.f32 %v1256, %v1256
    %v1289 = vmul.f32 %v1257, %v1257
    %v1290 = vmul.f32 %v1258, %v1258
    %v1291 = vmul.f32 %v1259, %v1259
    %v1292 = vmul.f32 %v1260, %v1260
    %v1293 = vmul.f32 %v1261, %v1261
    %v1294 = vmul.f32 %v1262, %v1262
    %v1295 = vmul.f32 %v1263, %v1263
    %v1296 = vmul.f32 %v1264, %v1264
    %v1297 = vmul.f32 %v1265, %v1265
    %v1298 = vmul.f32 %v1266, %v1266
    %v1299 = vmul.f32 %v1267, %v1267
    %v1300 = vmul.f32 %v1268, %v1268
    %v1301 = vmul.f32 %v1285, %v1253
    %v1302 = vmul.f32 %v1286, %v1254
    %v1303 = vmul.f32 %v1287, %v1255
    %v1304 = vmul.f32 %v1288, %v1256
    %v1305 = vmul.f32 %v1289, %v1257
    %v1306 = vmul.f32 %v1290, %v1258
    %v1307 = vmul.f32 %v1291, %v1259
    %v1308 = vmul.f32 %v1292, %v1260
    %v1309 = vmul.f32 %v1293, %v1261
    %v1310 = vmul.f32 %v1294, %v1262
    %v1311 = vmul.f32 %v1295, %v1263
    %v1312 = vmul.f32 %v1296, %v1264
    %v1313 = vmul.f32 %v1297, %v1265
    %v1314 = vmul.f32 %v1298, %v1266
    %v1315 = vmul.f32 %v1299, %v1267
    %v1316 = vmul.f32 %v1300, %v1268
    %v1317 = vmul.f32 %v1301, 0.044715
    %v1318 = vmul.f32 %v1302, 0.044715
    %v1319 = vmul.f32 %v1303, 0.044715
    %v1320 = vmul.f32 %v1304, 0.044715
    %v1321 = vmul.f32 %v1305, 0.044715
    %v1322 = vmul.f32 %v1306, 0.044715
    %v1323 = vmul.f32 %v1307, 0.044715
    %v1324 = vmul.f32 %v1308, 0.044715
    %v1325 = vmul.f32 %v1309, 0.044715
    %v1326 = vmul.f32 %v1310, 0.044715
    %v1327 = vmul.f32 %v1311, 0.044715
    %v1328 = vmul.f32 %v1312, 0.044715
    %v1329 = vmul.f32 %v1313, 0.044715
    %v1330 = vmul.f32 %v1314, 0.044715
    %v1331 = vmul.f32 %v1315, 0.044715
    %v1332 = vmul.f32 %v1316, 0.044715
    %v1333 = vadd.f32 %v1253, %v1317
    %v1334 = vadd.f32 %v1254, %v1318
    %v1335 = vadd.f32 %v1255, %v1319
    %v1336 = vadd.f32 %v1256, %v1320
    %v1337 = vadd.f32 %v1257, %v1321
    %v1338 = vadd.f32 %v1258, %v1322
    %v1339 = vadd.f32 %v1259, %v1323
    %v1340 = vadd.f32 %v1260, %v1324
    %v1341 = vadd.f32 %v1261, %v1325
    %v1342 = vadd.f32 %v1262, %v1326
    %v1343 = vadd.f32 %v1263, %v1327
    %v1344 = vadd.f32 %v1264, %v1328
    %v1345 = vadd.f32 %v1265, %v1329
    %v1346 = vadd.f32 %v1266, %v1330
    %v1347 = vadd.f32 %v1267, %v1331
    %v1348 = vadd.f32 %v1268, %v1332
    %v1349 = vmul.f32 %v1333, 0.7978846
    %v1350 = vmul.f32 %v1334, 0.7978846
    %v1351 = vmul.f32 %v1335, 0.7978846
    %v1352 = vmul.f32 %v1336, 0.7978846
    %v1353 = vmul.f32 %v1337, 0.7978846
    %v1354 = vmul.f32 %v1338, 0.7978846
    %v1355 = vmul.f32 %v1339, 0.7978846
    %v1356 = vmul.f32 %v1340, 0.7978846
    %v1357 = vmul.f32 %v1341, 0.7978846
    %v1358 = vmul.f32 %v1342, 0.7978846
    %v1359 = vmul.f32 %v1343, 0.7978846
    %v1360 = vmul.f32 %v1344, 0.7978846
    %v1361 = vmul.f32 %v1345, 0.7978846
    %v1362 = vmul.f32 %v1346, 0.7978846
    %v1363 = vmul.f32 %v1347, 0.7978846
    %v1364 = vmul.f32 %v1348, 0.7978846
    %v1365 = vtanh.pop %v1349
    %v1366 = vtanh.pop %v1350
    %v1367 = vtanh.pop %v1351
    %v1368 = vtanh.pop %v1352
    %v1369 = vtanh.pop %v1353
    %v1370 = vtanh.pop %v1354
    %v1371 = vtanh.pop %v1355
    %v1372 = vtanh.pop %v1356
    %v1373 = vtanh.pop %v1357
    %v1374 = vtanh.pop %v1358
    %v1375 = vtanh.pop %v1359
    %v1376 = vtanh.pop %v1360
    %v1377 = vtanh.pop %v1361
    %v1378 = vtanh.pop %v1362
    %v1379 = vtanh.pop %v1363
    %v1380 = vtanh.pop %v1364
    %v1381 = vadd.f32 %v1365, 1.0
    %v1382 = vadd.f32 %v1366, 1.0
    %v1383 = vadd.f32 %v1367, 1.0
    %v1384 = vadd.f32 %v1368, 1.0
    %v1385 = vadd.f32 %v1369, 1.0
    %v1386 = vadd.f32 %v1370, 1.0
    %v1387 = vadd.f32 %v1371, 1.0
    %v1388 = vadd.f32 %v1372, 1.0
    %v1389 = vadd.f32 %v1373, 1.0
    %v1390 = vadd.f32 %v1374, 1.0
    %v1391 = vadd.f32 %v1375, 1.0
    %v1392 = vadd.f32 %v1376, 1.0
    %v1393 = vadd.f32 %v1377, 1.0
    %v1394 = vadd.f32 %v1378, 1.0
    %v1395 = vadd.f32 %v1379, 1.0
    %v1396 = vadd.f32 %v1380, 1.0
    %v1397 = vmul.f32 %v1269, %v1381
    %v1398 = vmul.f32 %v1270, %v1382
    %v1399 = vmul.f32 %v1271, %v1383
    %v1400 = vmul.f32 %v1272, %v1384
    %v1401 = vmul.f32 %v1273, %v1385
    %v1402 = vmul.f32 %v1274, %v1386
    %v1403 = vmul.f32 %v1275, %v1387
    %v1404 = vmul.f32 %v1276, %v1388
    %v1405 = vmul.f32 %v1277, %v1389
    %v1406 = vmul.f32 %v1278, %v1390
    %v1407 = vmul.f32 %v1279, %v1391
    %v1408 = vmul.f32 %v1280, %v1392
    %v1409 = vmul.f32 %v1281, %v1393
    %v1410 = vmul.f32 %v1282, %v1394
    %v1411 = vmul.f32 %v1283, %v1395
    %v1412 = vmul.f32 %v1284, %v1396
    %v1413 = vld [vmem:[%s4] sm:$0xff]
    %v1414 = vadd.f32 %v1397, %v1398
    %1415 = vadd.xlane.f32.xlu0 %v1414
    %v1416 = vpop.xlane.xlu0 %1415
    %v1417 = vadd.f32 %v1401, %v1402
    %1418 = vadd.xlane.f32.xlu0 %v1417
    %v1419 = vpop.xlane.xlu0 %1418
    %v1420 = vadd.f32 %v1405, %v1406
    %1421 = vadd.xlane.f32.xlu0 %v1420
    %v1422 = vpop.xlane.xlu0 %1421
    %v1423 = vadd.f32 %v1409, %v1410
    %1424 = vadd.xlane.f32.xlu0 %v1423
    %v1425 = vpop.xlane.xlu0 %1424
    %v1426 = vmul.f32 %v1416, 0.00390625
    %v1427 = vmul.f32 %v1419, 0.00390625
    %v1428 = vmul.f32 %v1422, 0.00390625
    %v1429 = vmul.f32 %v1425, 0.00390625
    %v1430 = vmul.f32 %v35, %v1426
    %v1431 = vmul.f32 %v36, %v1427
    %v1432 = vmul.f32 %v37, %v1428
    %v1433 = vmul.f32 %v38, %v1429
    %1434 = vrot.lane.b32.xlu0 %v35, 127
    %v1435 = vpop.permute.xlu0 %1434
    %1436 = vrot.lane.b32.xlu0 %v36, 127
    %v1437 = vpop.permute.xlu0 %1436
    %1438 = vrot.lane.b32.xlu0 %v37, 127
    %v1439 = vpop.permute.xlu0 %1438
    %1440 = vrot.lane.b32.xlu0 %v38, 127
    %v1441 = vpop.permute.xlu0 %1440
    %v1446 = vadd.f32 %v1430, %v1435
    %v1447 = vadd.f32 %v1431, %v1437
    %v1448 = vadd.f32 %v1432, %v1439
    %v1449 = vadd.f32 %v1433, %v1441
    %1451 = vset.pattern.permute.xlu0 3
    %1452 = vperm.xlu0 %1451, %v1446
    %v1453 = vpop.permute.xlu0 %1452
    %1456 = vset.pattern.permute.xlu0 3
    %1457 = vperm.xlu0 %1456, %v1447
    %v1458 = vpop.permute.xlu0 %1457
    %1461 = vset.pattern.permute.xlu0 3
    %1462 = vperm.xlu0 %1461, %v1448
    %v1463 = vpop.permute.xlu0 %1462
    %1466 = vset.pattern.permute.xlu0 3
    %1467 = vperm.xlu0 %1466, %v1449
    %v1468 = vpop.permute.xlu0 %1467
    %v1470 = vmul.f32 %v1453, %v35
    %v1471 = vmul.f32 %v1458, %v36
    %v1472 = vmul.f32 %v1463, %v37
    %v1473 = vmul.f32 %v1468, %v38
    %vm1474 = vcmask 64560
    %v1475 = vsel %vm1474, %v1470, 0.0
    %v1476 = vsel %vm1474, %v1471, 0.0
    %v1477 = vadd.f32 %v1475, %v1476
    %v1478 = vsel %vm1474, %v1472, 0.0
    %v1479 = vadd.f32 %v1477, %v1478
    %v1480 = vsel %vm1474, %v1473, 0.0
    %v1481 = vadd.f32 %v1479, %v1480
    %v1482 = vrot.slane %v1481, 4
    %v1483 = vadd.f32 %v1481, %v1482
    %v1484 = vrot.slane %v1483, 2
    %v1485 = vadd.f32 %v1483, %v1484
    %v1486 = vrot.slane %v1485, 1
    %v1487 = vadd.f32 %v1485, %v1486
    %v1488 = vmax.f32 %v1487, 0.0
    %1490 = vrot.lane.b32.xlu0 %v1488, 2
    %v1491 = vpop.permute.xlu0 %1490
    %v1493 = vmul.f32 %v35, %v1491
    %v1494 = vmul.f32 %v36, %v1491
    %v1495 = vmul.f32 %v37, %v1491
    %v1496 = vmul.f32 %v38, %v1491
    %1501 = vrot.lane.b32.xlu0 %v1493, 120
    %v1502 = vpop.permute.xlu0 %1501
    %1503 = vrot.lane.b32.xlu0 %v1494, 120
    %v1504 = vpop.permute.xlu0 %1503
    %1505 = vrot.lane.b32.xlu0 %v1495, 120
    %v1506 = vpop.permute.xlu0 %1505
    %1507 = vrot.lane.b32.xlu0 %v1496, 120
    %v1508 = vpop.permute.xlu0 %1507
    %vm1513 = vcmask 15360
    %v1514 = vsel %vm1513, %v1502, 0.0
    %1515 = vadd.xlane.f32.xlu0 %v1514
    %v1516 = vpop.xlane.xlu0 %1515
    %v1517 = vsel %vm1513, %v1504, 0.0
    %1518 = vadd.xlane.f32.xlu0 %v1517
    %v1519 = vpop.xlane.xlu0 %1518
    %v1520 = vsel %vm1513, %v1506, 0.0
    %1521 = vadd.xlane.f32.xlu0 %v1520
    %v1522 = vpop.xlane.xlu0 %1521
    %v1523 = vsel %vm1513, %v1508, 0.0
    %1524 = vadd.xlane.f32.xlu0 %v1523
    %v1525 = vpop.xlane.xlu0 %1524
    %v1526 = vxor.u32 %v1516, 2147483648
    %v1527 = vxor.u32 %v1519, 2147483648
    %v1528 = vxor.u32 %v1522, 2147483648
    %v1529 = vxor.u32 %v1525, 2147483648
    %v1530 = vmul.f32 %v1526, 1.442695
    %v1531 = vpow.pop %v1530
    %v1532 = vmul.f32 %v1527, 1.442695
    %v1533 = vpow.pop %v1532
    %v1534 = vmul.f32 %v1528, 1.442695
    %v1535 = vpow.pop %v1534
    %v1536 = vmul.f32 %v1529, 1.442695
    %v1537 = vpow.pop %v1536
    %v1538 = vadd.f32 %v1531, 1.0
    %v1539 = vadd.f32 %v1533, 1.0
    %v1540 = vadd.f32 %v1535, 1.0
    %v1541 = vadd.f32 %v1537, 1.0
    %v1542 = vrcp.pop %v1538
    %v1543 = vmul.f32 1.0, %v1542
    %v1544 = vrcp.pop %v1539
    %v1545 = vmul.f32 1.0, %v1544
    %v1546 = vrcp.pop %v1540
    %v1547 = vmul.f32 1.0, %v1546
    %v1548 = vrcp.pop %v1541
    %v1549 = vmul.f32 1.0, %v1548
    %v1550 = vmul.f32 %v35, %v1543
    %v1551 = vmul.f32 %v36, %v1545
    %v1552 = vmul.f32 %v37, %v1547
    %v1553 = vmul.f32 %v38, %v1549
    %1555 = vset.pattern.permute.xlu0 3
    %1556 = vperm.xlu0 %1555, %v1550
    %v1557 = vpop.permute.xlu0 %1556
    %1560 = vset.pattern.permute.xlu0 3
    %1561 = vperm.xlu0 %1560, %v1551
    %v1562 = vpop.permute.xlu0 %1561
    %1565 = vset.pattern.permute.xlu0 3
    %1566 = vperm.xlu0 %1565, %v1552
    %v1567 = vpop.permute.xlu0 %1566
    %1570 = vset.pattern.permute.xlu0 3
    %1571 = vperm.xlu0 %1570, %v1553
    %v1572 = vpop.permute.xlu0 %1571
    %v1574 = vmul.f32 %v1397, %v1557
    %v1575 = vmul.f32 %v1398, %v1557
    %v1576 = vmul.f32 %v1401, %v1562
    %v1577 = vmul.f32 %v1402, %v1562
    %v1578 = vmul.f32 %v1405, %v1567
    %v1579 = vmul.f32 %v1406, %v1567
    %v1580 = vmul.f32 %v1409, %v1572
    %v1581 = vmul.f32 %v1410, %v1572
    %1582 = vset.pattern.permute.xlu0 4
    %1583 = vperm.xlu0 %1582, %v1550
    %v1584 = vpop.permute.xlu0 %1583
    %1586 = vset.pattern.permute.xlu0 4
    %1587 = vperm.xlu0 %1586, %v1551
    %v1588 = vpop.permute.xlu0 %1587
    %1590 = vset.pattern.permute.xlu0 4
    %1591 = vperm.xlu0 %1590, %v1552
    %v1592 = vpop.permute.xlu0 %1591
    %1594 = vset.pattern.permute.xlu0 4
    %1595 = vperm.xlu0 %1594, %v1553
    %v1596 = vpop.permute.xlu0 %1595
    %v1598 = vadd.f32 %v1574, %v1584
    %v1599 = vadd.f32 %v1575, %v1584
    %v1600 = vadd.f32 %v1576, %v1588
    %v1601 = vadd.f32 %v1577, %v1588
    %v1602 = vadd.f32 %v1578, %v1592
    %v1603 = vadd.f32 %v1579, %v1592
    %v1604 = vadd.f32 %v1580, %v1596
    %v1605 = vadd.f32 %v1581, %v1596
    %1606 = vset.pattern.permute.xlu0 5
    %1607 = vperm.xlu0 %1606, %v35
    %v1608 = vpop.permute.xlu0 %1607
    %vm1610 = vcmask 261120
    %v1612 = vsel %vm1610, %v1413, 0
    %1614 = vmatprep.subr.mxu0 %v1599
    %1615 = vmatpush1.msra.mxu0 %v1598
    %1616 = vmatprep.subr.mxu0 %v1601
    %1617 = vmatpush1.msra.mxu0 %v1600
    %1618 = vmatprep.subr.mxu0 %v1603
    %1619 = vmatpush1.msra.mxu0 %v1602
    %1620 = vmatprep.subr.mxu0 %v1605
    %1621 = vmatpush1.msra.mxu0 %v1604
    %1622 = vmatprep.subr.mxu0 0.0
    %1623 = vmatpush1.msra.mxu0 0.0
    %1624 = vmatprep.subr.mxu0 0.0
    %1625 = vmatpush1.msra.mxu0 0.0
    %1626 = vmatprep.subr.mxu0 0.0
    %1627 = vmatpush1.msra.mxu0 0.0
    %1628 = vmatprep.subr.mxu0 0.0
    %1629 = vmatpush1.msra.mxu0 0.0
    %1630 = vmatprep.subr.mxu0 0.0
    %1631 = vmatpush1.msra.mxu0 0.0
    %1632 = vmatprep.subr.mxu0 0.0
    %1633 = vmatpush1.msra.mxu0 0.0
    %1634 = vmatprep.subr.mxu0 0.0
    %1635 = vmatpush1.msra.mxu0 0.0
    %1636 = vmatprep.subr.mxu0 0.0
    %1637 = vmatpush1.msra.mxu0 0.0
    %1638 = vmatprep.subr.mxu0 0.0
    %1639 = vmatpush1.msra.mxu0 0.0
    %1640 = vmatprep.subr.mxu0 0.0
    %1641 = vmatpush1.msra.mxu0 0.0
    %1642 = vmatprep.subr.mxu0 0.0
    %1643 = vmatpush1.msra.mxu0 0.0
    %1644 = vmatprep.subr.mxu0 0.0
    %1645 = vmatpush1.msra.mxu0 0.0
    %1646 = vmatprep.subr.mxu0 0.0
    %1647 = vmatpush1.msra.mxu0 0.0
    %1648 = vmatprep.subr.mxu0 0.0
    %1649 = vmatpush1.msra.mxu0 0.0
    %1650 = vmatprep.subr.mxu0 0.0
    %1651 = vmatpush1.msra.mxu0 0.0
    %1652 = vmatprep.subr.mxu0 0.0
    %1653 = vmatpush1.msra.mxu0 0.0
    %1654 = vmatprep.subr.mxu0 0.0
    %1655 = vmatpush1.msra.mxu0 0.0
    %1656 = vmatprep.subr.mxu0 0.0
    %1657 = vmatpush1.msra.mxu0 0.0
    %1658 = vmatprep.subr.mxu0 0.0
    %1659 = vmatpush1.msra.mxu0 0.0
    %1660 = vmatprep.subr.mxu0 0.0
    %1661 = vmatpush1.msra.mxu0 0.0
    %1662 = vmatprep.subr.mxu0 0.0
    %1663 = vmatpush1.msra.mxu0 0.0
    %1664 = vmatprep.subr.mxu0 0.0
    %1665 = vmatpush1.msra.mxu0 0.0
    %1666 = vmatprep.subr.mxu0 0.0
    %1667 = vmatpush1.msra.mxu0 0.0
    %1668 = vmatprep.subr.mxu0 0.0
    %1669 = vmatpush1.msra.mxu0 0.0
    %1670 = vmatprep.subr.mxu0 0.0
    %1671 = vmatpush1.msra.mxu0 0.0
    %1672 = vmatprep.subr.mxu0 0.0
    %1673 = vmatpush1.msra.mxu0 0.0
    %1674 = vmatprep.subr.mxu0 0.0
    %1675 = vmatpush1.msra.mxu0 0.0
    %1676 = vmatprep.subr.mxu0 0.0
    %1677 = vmatpush1.msra.mxu0 0.0
    %1678 = vmatprep.mubr.f32.mxu0 0.0
    %1679 = vmatmul.mubr.f32.gmra.mrb[0].mxu0 %v1612
    %v1680 = vpop.f32.mrb[0].mxu0
    %v1681 = vadd.f32 %v1608, %v1680
    %v1682 = vpop.f32.mrb[0].mxu0
    %v1683 = vadd.f32 %v1608, %v1682
    %1684 = vdwg.mxu0
    %v1685 = vadd.f32 %v1681, %v56
    %v1686 = vadd.f32 %v1683, %v57
    %1687 = vst [vmem:[#allocation5] sm:$0xff] %v1685
    %1688 = vst [vmem:[#allocation5 + $0x8] sm:$0xff] %v1686
    %v1689 = vadd.f32 %v1399, %v1400
    %1690 = vadd.xlane.f32.xlu0 %v1689
    %v1691 = vpop.xlane.xlu0 %1690
    %v1692 = vadd.f32 %v1403, %v1404
    %1693 = vadd.xlane.f32.xlu0 %v1692
    %v1694 = vpop.xlane.xlu0 %1693
    %v1695 = vadd.f32 %v1407, %v1408
    %1696 = vadd.xlane.f32.xlu0 %v1695
    %v1697 = vpop.xlane.xlu0 %1696
    %v1698 = vadd.f32 %v1411, %v1412
    %1699 = vadd.xlane.f32.xlu0 %v1698
    %v1700 = vpop.xlane.xlu0 %1699
    %v1701 = vmul.f32 %v1691, 0.00390625
    %v1702 = vmul.f32 %v1694, 0.00390625
    %v1703 = vmul.f32 %v1697, 0.00390625
    %v1704 = vmul.f32 %v1700, 0.00390625
    %v1705 = vmul.f32 %v35, %v1701
    %v1706 = vmul.f32 %v36, %v1702
    %v1707 = vmul.f32 %v37, %v1703
    %v1708 = vmul.f32 %v38, %v1704
    %v1709 = vadd.f32 %v1705, %v1435
    %v1710 = vadd.f32 %v1706, %v1437
    %v1711 = vadd.f32 %v1707, %v1439
    %v1712 = vadd.f32 %v1708, %v1441
    %1714 = vset.pattern.permute.xlu0 3
    %1715 = vperm.xlu0 %1714, %v1709
    %v1716 = vpop.permute.xlu0 %1715
    %1719 = vset.pattern.permute.xlu0 3
    %1720 = vperm.xlu0 %1719, %v1710
    %v1721 = vpop.permute.xlu0 %1720
    %1724 = vset.pattern.permute.xlu0 3
    %1725 = vperm.xlu0 %1724, %v1711
    %v1726 = vpop.permute.xlu0 %1725
    %1729 = vset.pattern.permute.xlu0 3
    %1730 = vperm.xlu0 %1729, %v1712
    %v1731 = vpop.permute.xlu0 %1730
    %v1733 = vmul.f32 %v1716, %v35
    %v1734 = vmul.f32 %v1721, %v36
    %v1735 = vmul.f32 %v1726, %v37
    %v1736 = vmul.f32 %v1731, %v38
    %v1737 = vsel %vm1474, %v1733, 0.0
    %v1738 = vsel %vm1474, %v1734, 0.0
    %v1739 = vadd.f32 %v1737, %v1738
    %v1740 = vsel %vm1474, %v1735, 0.0
    %v1741 = vadd.f32 %v1739, %v1740
    %v1742 = vsel %vm1474, %v1736, 0.0
    %v1743 = vadd.f32 %v1741, %v1742
    %v1744 = vrot.slane %v1743, 4
    %v1745 = vadd.f32 %v1743, %v1744
    %v1746 = vrot.slane %v1745, 2
    %v1747 = vadd.f32 %v1745, %v1746
    %v1748 = vrot.slane %v1747, 1
    %v1749 = vadd.f32 %v1747, %v1748
    %v1750 = vmax.f32 %v1749, 0.0
    %1752 = vrot.lane.b32.xlu0 %v1750, 2
    %v1753 = vpop.permute.xlu0 %1752
    %v1755 = vmul.f32 %v35, %v1753
    %v1756 = vmul.f32 %v36, %v1753
    %v1757 = vmul.f32 %v37, %v1753
    %v1758 = vmul.f32 %v38, %v1753
    %1763 = vrot.lane.b32.xlu0 %v1755, 120
    %v1764 = vpop.permute.xlu0 %1763
    %1765 = vrot.lane.b32.xlu0 %v1756, 120
    %v1766 = vpop.permute.xlu0 %1765
    %1767 = vrot.lane.b32.xlu0 %v1757, 120
    %v1768 = vpop.permute.xlu0 %1767
    %1769 = vrot.lane.b32.xlu0 %v1758, 120
    %v1770 = vpop.permute.xlu0 %1769
    %v1775 = vsel %vm1513, %v1764, 0.0
    %1776 = vadd.xlane.f32.xlu0 %v1775
    %v1777 = vpop.xlane.xlu0 %1776
    %v1778 = vsel %vm1513, %v1766, 0.0
    %1779 = vadd.xlane.f32.xlu0 %v1778
    %v1780 = vpop.xlane.xlu0 %1779
    %v1781 = vsel %vm1513, %v1768, 0.0
    %1782 = vadd.xlane.f32.xlu0 %v1781
    %v1783 = vpop.xlane.xlu0 %1782
    %v1784 = vsel %vm1513, %v1770, 0.0
    %1785 = vadd.xlane.f32.xlu0 %v1784
    %v1786 = vpop.xlane.xlu0 %1785
    %v1787 = vxor.u32 %v1777, 2147483648
    %v1788 = vxor.u32 %v1780, 2147483648
    %v1789 = vxor.u32 %v1783, 2147483648
    %v1790 = vxor.u32 %v1786, 2147483648
    %v1791 = vmul.f32 %v1787, 1.442695
    %v1792 = vpow.pop %v1791
    %v1793 = vmul.f32 %v1788, 1.442695
    %v1794 = vpow.pop %v1793
    %v1795 = vmul.f32 %v1789, 1.442695
    %v1796 = vpow.pop %v1795
    %v1797 = vmul.f32 %v1790, 1.442695
    %v1798 = vpow.pop %v1797
    %v1799 = vadd.f32 %v1792, 1.0
    %v1800 = vadd.f32 %v1794, 1.0
    %v1801 = vadd.f32 %v1796, 1.0
    %v1802 = vadd.f32 %v1798, 1.0
    %v1803 = vrcp.pop %v1799
    %v1804 = vmul.f32 1.0, %v1803
    %v1805 = vrcp.pop %v1800
    %v1806 = vmul.f32 1.0, %v1805
    %v1807 = vrcp.pop %v1801
    %v1808 = vmul.f32 1.0, %v1807
    %v1809 = vrcp.pop %v1802
    %v1810 = vmul.f32 1.0, %v1809
    %v1811 = vmul.f32 %v35, %v1804
    %v1812 = vmul.f32 %v36, %v1806
    %v1813 = vmul.f32 %v37, %v1808
    %v1814 = vmul.f32 %v38, %v1810
    %1816 = vset.pattern.permute.xlu0 3
    %1817 = vperm.xlu0 %1816, %v1811
    %v1818 = vpop.permute.xlu0 %1817
    %1821 = vset.pattern.permute.xlu0 3
    %1822 = vperm.xlu0 %1821, %v1812
    %v1823 = vpop.permute.xlu0 %1822
    %1826 = vset.pattern.permute.xlu0 3
    %1827 = vperm.xlu0 %1826, %v1813
    %v1828 = vpop.permute.xlu0 %1827
    %1831 = vset.pattern.permute.xlu0 3
    %1832 = vperm.xlu0 %1831, %v1814
    %v1833 = vpop.permute.xlu0 %1832
    %v1835 = vmul.f32 %v1399, %v1818
    %v1836 = vmul.f32 %v1400, %v1818
    %v1837 = vmul.f32 %v1403, %v1823
    %v1838 = vmul.f32 %v1404, %v1823
    %v1839 = vmul.f32 %v1407, %v1828
    %v1840 = vmul.f32 %v1408, %v1828
    %v1841 = vmul.f32 %v1411, %v1833
    %v1842 = vmul.f32 %v1412, %v1833
    %1843 = vset.pattern.permute.xlu0 4
    %1844 = vperm.xlu0 %1843, %v1811
    %v1845 = vpop.permute.xlu0 %1844
    %1847 = vset.pattern.permute.xlu0 4
    %1848 = vperm.xlu0 %1847, %v1812
    %v1849 = vpop.permute.xlu0 %1848
    %1851 = vset.pattern.permute.xlu0 4
    %1852 = vperm.xlu0 %1851, %v1813
    %v1853 = vpop.permute.xlu0 %1852
    %1855 = vset.pattern.permute.xlu0 4
    %1856 = vperm.xlu0 %1855, %v1814
    %v1857 = vpop.permute.xlu0 %1856
    %v1859 = vadd.f32 %v1835, %v1845
    %v1860 = vadd.f32 %v1836, %v1845
    %v1861 = vadd.f32 %v1837, %v1849
    %v1862 = vadd.f32 %v1838, %v1849
    %v1863 = vadd.f32 %v1839, %v1853
    %v1864 = vadd.f32 %v1840, %v1853
    %v1865 = vadd.f32 %v1841, %v1857
    %v1866 = vadd.f32 %v1842, %v1857
    %1867 = vmatprep.subr.mxu0 %v1860
    %1868 = vmatpush1.msra.mxu0 %v1859
    %1869 = vmatprep.subr.mxu0 %v1862
    %1870 = vmatpush1.msra.mxu0 %v1861
    %1871 = vmatprep.subr.mxu0 %v1864
    %1872 = vmatpush1.msra.mxu0 %v1863
    %1873 = vmatprep.subr.mxu0 %v1866
    %1874 = vmatpush1.msra.mxu0 %v1865
    %1875 = vmatprep.subr.mxu0 0.0
    %1876 = vmatpush1.msra.mxu0 0.0
    %1877 = vmatprep.subr.mxu0 0.0
    %1878 = vmatpush1.msra.mxu0 0.0
    %1879 = vmatprep.subr.mxu0 0.0
    %1880 = vmatpush1.msra.mxu0 0.0
    %1881 = vmatprep.subr.mxu0 0.0
    %1882 = vmatpush1.msra.mxu0 0.0
    %1883 = vmatprep.subr.mxu0 0.0
    %1884 = vmatpush1.msra.mxu0 0.0
    %1885 = vmatprep.subr.mxu0 0.0
    %1886 = vmatpush1.msra.mxu0 0.0
    %1887 = vmatprep.subr.mxu0 0.0
    %1888 = vmatpush1.msra.mxu0 0.0
    %1889 = vmatprep.subr.mxu0 0.0
    %1890 = vmatpush1.msra.mxu0 0.0
    %1891 = vmatprep.subr.mxu0 0.0
    %1892 = vmatpush1.msra.mxu0 0.0
    %1893 = vmatprep.subr.mxu0 0.0
    %1894 = vmatpush1.msra.mxu0 0.0
    %1895 = vmatprep.subr.mxu0 0.0
    %1896 = vmatpush1.msra.mxu0 0.0
    %1897 = vmatprep.subr.mxu0 0.0
    %1898 = vmatpush1.msra.mxu0 0.0
    %1899 = vmatprep.subr.mxu0 0.0
    %1900 = vmatpush1.msra.mxu0 0.0
    %1901 = vmatprep.subr.mxu0 0.0
    %1902 = vmatpush1.msra.mxu0 0.0
    %1903 = vmatprep.subr.mxu0 0.0
    %1904 = vmatpush1.msra.mxu0 0.0
    %1905 = vmatprep.subr.mxu0 0.0
    %1906 = vmatpush1.msra.mxu0 0.0
    %1907 = vmatprep.subr.mxu0 0.0
    %1908 = vmatpush1.msra.mxu0 0.0
    %1909 = vmatprep.subr.mxu0 0.0
    %1910 = vmatpush1.msra.mxu0 0.0
    %1911 = vmatprep.subr.mxu0 0.0
    %1912 = vmatpush1.msra.mxu0 0.0
    %1913 = vmatprep.subr.mxu0 0.0
    %1914 = vmatpush1.msra.mxu0 0.0
    %1915 = vmatprep.subr.mxu0 0.0
    %1916 = vmatpush1.msra.mxu0 0.0
    %1917 = vmatprep.subr.mxu0 0.0
    %1918 = vmatpush1.msra.mxu0 0.0
    %1919 = vmatprep.subr.mxu0 0.0
    %1920 = vmatpush1.msra.mxu0 0.0
    %1921 = vmatprep.subr.mxu0 0.0
    %1922 = vmatpush1.msra.mxu0 0.0
    %1923 = vmatprep.subr.mxu0 0.0
    %1924 = vmatpush1.msra.mxu0 0.0
    %1925 = vmatprep.subr.mxu0 0.0
    %1926 = vmatpush1.msra.mxu0 0.0
    %1927 = vmatprep.subr.mxu0 0.0
    %1928 = vmatpush1.msra.mxu0 0.0
    %1929 = vmatprep.subr.mxu0 0.0
    %1930 = vmatpush1.msra.mxu0 0.0
    %1931 = vmatprep.mubr.f32.mxu0 0.0
    %1932 = vmatmul.mubr.f32.gmra.mrb[0].mxu0 %v1612
    %v1933 = vpop.f32.mrb[0].mxu0
    %v1934 = vadd.f32 %v1608, %v1933
    %v1935 = vpop.f32.mrb[0].mxu0
    %v1936 = vadd.f32 %v1608, %v1935
    %1937 = vdwg.mxu0
    %v1938 = vadd.f32 %v1934, %v58
    %v1939 = vadd.f32 %v1936, %v59
    %s1940 = scalar_lea.vmem [#allocation5], 16
    %1941 = vst [vmem:[%s1940] sm:$0xff] %v1938
    %1942 = vst [vmem:[%s1940 + $0x8] sm:$0xff] %v1939
    // Predicated region
    $region26: #{tpu_custom_call.1} parent=1 // pred_check
      _
    $region27: #{tpu_custom_call.1} parent=1 // pred_check_branch
      %1944 = sbr.rel (0) target = $region29
    $region28: #{tpu_custom_call.1} parent=1 // pred_region
      %s1946 = ssub.s32 512, 512
      %1947 = vsyncadd [#allocation4], %s1946
      %s1948 = sshll.u32 [#allocation5], 4
      %s1949 = int_to_ptr.vmem [resolvable:$true] %s1948
      %1954 = dma.vmem_to_hbm [thread:$0]  %s1949, 512, %s5, [#allocation4], 256, 256, 16
    $region29: #{tpu_custom_call.1} parent=1 // pred_fallthru
      _
    // Predicated region
    $region30: #{tpu_custom_call.1} parent=1 // pred_check
      _
    $region31: #{tpu_custom_call.1} parent=1 // pred_check_branch
      %1956 = sbr.rel (0) target = $region33
    $region32: #{tpu_custom_call.1} parent=1 // pred_region
      %1957 = dma.done [#allocation4], 512
    $region33: #{tpu_custom_call.1} parent=1 // pred_fallthru
      _
    %1958 = vsyncpa [#allocation3], 1
    %1959 = vsyncpa [#allocation4], 1

</llo_original>
